<compile_context>
chip_gen: v6e
topology: v6e:2x2x1
jax: 0.10.0
libtpu: 0.0.40
codegen_flags: <defaults>
</compile_context>

<pallas_src>
import functools
import math

import jax
import jax.numpy as jnp
import numpy as np
from jax import lax
from jax.experimental import pallas as pl
from jax.experimental.pallas import tpu as pltpu


_NEG_BIG = -1e30                       # finite mask bias (scores stay f32 -> no NaN risk)
_VMEM_LIMIT = 48 * 1024 * 1024         # leave headroom on v7x (64 MiB physical per TC)


def _layernorm(z, g, b, eps=1e-5):
    mu = jnp.mean(z, axis=-1, keepdims=True)
    var = jnp.mean((z - mu) ** 2, axis=-1, keepdims=True)
    return (z - mu) * lax.rsqrt(var + eps) * g + b


# --------------------- pass 1: LN1 + fused QKV projection ----------------------

def _qkv_kernel(x_ref, ln1_g_ref, ln1_b_ref,
                wq_ref, bq_ref, wk_ref, bk_ref, wv_ref, bv_ref,
                q_ref, k_ref, v_ref,
                *, n_head, dh, compute_dtype):
    t = x_ref.shape[1]
    h = _layernorm(x_ref[0], ln1_g_ref[...], ln1_b_ref[...]).astype(compute_dtype)

    def proj(w_ref, b_ref, out_ref):
        y = jnp.dot(h, w_ref[...], preferred_element_type=jnp.float32) + b_ref[...]
        # head-major (H, t, dh): one relayout here, none in the attention inner loop.
        out_ref[0] = jnp.transpose(y.reshape(t, n_head, dh), (1, 0, 2)).astype(compute_dtype)

    proj(wq_ref, bq_ref, q_ref)   # 1/sqrt(dh) already folded into wq / bq
    proj(wk_ref, bk_ref, k_ref)
    proj(wv_ref, bv_ref, v_ref)


# ---- pass 2: packed-causal flash attention + out-proj + residual + LN2 + MLP ----

def _flash_block_kernel(qi_ref, ki_ref,                 # scalar-prefetch (SMEM)
                        x_q_ref, q_ref, k_ref, v_ref,
                        wo_ref, bo_ref,
                        ln2_g_ref, ln2_b_ref,
                        wfc_ref, bfc_ref, wmp_ref, bmp_ref,
                        o_ref,
                        m_sc, l_sc, acc_sc,
                        *, n_head, dh, tq, tk, compute_dtype):
    s_idx = pl.program_id(1)
    qi = qi_ref[s_idx]
    ki = ki_ref[s_idx]

    # ---- first kv tile of this q tile: reset online-softmax state ----
    @pl.when(ki == 0)
    def _init():
        m_sc[...] = jnp.full((n_head, tq, 1), _NEG_BIG, jnp.float32)
        l_sc[...] = jnp.zeros((n_head, tq, 1), jnp.float32)
        acc_sc[...] = jnp.zeros((n_head, tq, dh), jnp.float32)

    # ---- scores for all heads at once (batched MXU matmul), q/k already head-major bf16 ----
    s = jnp.einsum('hqd,hkd->hqk', q_ref[0], k_ref[0],
                   preferred_element_type=jnp.float32)

    def _online_update(scores):
        m_prev = m_sc[...]
        m_new = jnp.maximum(m_prev, jnp.max(scores, axis=-1, keepdims=True))
        alpha = jnp.exp(m_prev - m_new)
        p = jnp.exp(scores - m_new)
        l_sc[...] = alpha * l_sc[...] + jnp.sum(p, axis=-1, keepdims=True)
        acc_sc[...] = alpha * acc_sc[...] + jnp.einsum(
            'hqk,hkd->hqd', p.astype(compute_dtype), v_ref[0],
            preferred_element_type=jnp.float32)
        m_sc[...] = m_new

    # only tiles that straddle the diagonal need the causal mask
    needs_mask = (ki * tk + (tk - 1)) > (qi * tq)

    @pl.when(needs_mask)
    def _masked():
        row = qi * tq + lax.broadcasted_iota(jnp.int32, (tq, tk), 0)
        col = ki * tk + lax.broadcasted_iota(jnp.int32, (tq, tk), 1)
        _online_update(jnp.where((row >= col)[None, :, :], s, _NEG_BIG))

    @pl.when(jnp.logical_not(needs_mask))
    def _unmasked():
        _online_update(s)

    # ---- diagonal kv tile of this q tile: finish attention, out-proj + residual,
    #      LN2 + MLP(GELU tanh) + residual, write output tile ----
    @pl.when(ki == (qi * tq + (tq - 1)) // tk)
    def _finalize():
        y = acc_sc[...] * pl.reciprocal(l_sc[...], approx=True)       # (H, tq, dh)
        y = jnp.transpose(y, (1, 0, 2)).reshape(tq, n_head * dh)      # (tq, C)
        y = jnp.dot(y.astype(compute_dtype), wo_ref[...],
                    preferred_element_type=jnp.float32) + bo_ref[...]
        x1 = x_q_ref[0] + y                                           # residual 1

        h2 = _layernorm(x1, ln2_g_ref[...], ln2_b_ref[...])
        u = jnp.dot(h2.astype(compute_dtype), wfc_ref[...],
                    preferred_element_type=jnp.float32) + bfc_ref[...]
        c0 = math.sqrt(2.0 / math.pi)                                 # GELU (tanh approx)
        u = 0.5 * u * (1.0 + jnp.tanh(c0 * (u + 0.044715 * u * u * u)))
        mlp = jnp.dot(u.astype(compute_dtype), wmp_ref[...],
                      preferred_element_type=jnp.float32) + bmp_ref[...]
        o_ref[0] = (x1 + mlp).astype(o_ref.dtype)                     # residual 2


# ---------------------------------- wrapper ------------------------------------

def gpt2_block(x, params, *, n_head, tq=None, tk=None, compute_dtype=jnp.bfloat16):
    B, T, C = x.shape
    assert C % n_head == 0
    dh = C // n_head
    tq = tq or min(256, T)   # 256 fills the v6e/v7x MXU better; pass tq=tk=128 on v5e
    tk = tk or min(256, T)
    assert T % tq == 0 and T % tk == 0, "T must divide the chosen tile sizes"

    p = params
    scale = 1.0 / math.sqrt(dh)
    # split c_attn; fold the attention scale into the q projection at trace time.
    wq = (p['w_attn'][:, 0 * C:1 * C] * scale).astype(compute_dtype)
    wk = p['w_attn'][:, 1 * C:2 * C].astype(compute_dtype)
    wv = p['w_attn'][:, 2 * C:3 * C].astype(compute_dtype)
    bq = p['b_attn'][:, 0 * C:1 * C] * scale
    bk = p['b_attn'][:, 1 * C:2 * C]
    bv = p['b_attn'][:, 2 * C:3 * C]
    wo = p['w_attnproj'].astype(compute_dtype)
    wfc = p['w_fc'].astype(compute_dtype)
    wmp = p['w_mlpproj'].astype(compute_dtype)

    # weights / biases / LN params: whole-array VMEM residents (no double buffering).
    vmem = pl.BlockSpec(memory_space=pltpu.MemorySpace.VMEM)
    cparams = pltpu.CompilerParams(
        dimension_semantics=("parallel", "arbitrary"),
        vmem_limit_bytes=_VMEM_LIMIT)

    # ---------------- pass 1: LN1 + QKV projection, head-major bf16 ----------------
    qkv_shape = jax.ShapeDtypeStruct((B, n_head, T, dh), compute_dtype)
    q_hm, k_hm, v_hm = pl.pallas_call(
        functools.partial(_qkv_kernel, n_head=n_head, dh=dh, compute_dtype=compute_dtype),
        out_shape=(qkv_shape, qkv_shape, qkv_shape),
        grid=(B, T // tq),
        in_specs=[
            pl.BlockSpec((1, tq, C), lambda b, t: (b, t, 0)),
            vmem, vmem,                      # ln1 gamma / beta
            vmem, vmem, vmem, vmem, vmem, vmem,  # wq,bq, wk,bk, wv,bv
        ],
        out_specs=(
            pl.BlockSpec((1, n_head, tq, dh), lambda b, t: (b, 0, t, 0)),
            pl.BlockSpec((1, n_head, tq, dh), lambda b, t: (b, 0, t, 0)),
            pl.BlockSpec((1, n_head, tq, dh), lambda b, t: (b, 0, t, 0)),
        ),
        compiler_params=pltpu.CompilerParams(
            dimension_semantics=("parallel", "parallel"),
            vmem_limit_bytes=_VMEM_LIMIT),
    )(x, p['ln1_g'], p['ln1_b'], wq, bq, wk, bk, wv, bv)

    # -------- pass 2: packed lower-triangular (q_tile, kv_tile) flash grid ---------
    n_q = T // tq
    q_idx_list, k_idx_list = [], []
    for qi in range(n_q):
        diag = (qi * tq + tq - 1) // tk
        for ki in range(diag + 1):
            q_idx_list.append(qi)
            k_idx_list.append(ki)
    n_steps = len(q_idx_list)
    q_idx = jnp.asarray(q_idx_list, jnp.int32)
    k_idx = jnp.asarray(k_idx_list, jnp.int32)

    grid_spec = pltpu.PrefetchScalarGridSpec(
        num_scalar_prefetch=2,
        grid=(B, n_steps),
        in_specs=[
            # x rows of this q tile (residual path) -- refetched only when qi changes
            pl.BlockSpec((1, tq, C), lambda b, s, qi, ki: (b, qi[s], 0)),
            # head-major Q tile -- refetched only when qi changes
            pl.BlockSpec((1, n_head, tq, dh), lambda b, s, qi, ki: (b, 0, qi[s], 0)),
            # head-major K / V tiles for this packed step
            pl.BlockSpec((1, n_head, tk, dh), lambda b, s, qi, ki: (b, 0, ki[s], 0)),
            pl.BlockSpec((1, n_head, tk, dh), lambda b, s, qi, ki: (b, 0, ki[s], 0)),
            vmem, vmem,          # attn out proj w, b
            vmem, vmem,          # ln2 gamma / beta
            vmem, vmem,          # mlp fc w, b
            vmem, vmem,          # mlp proj w, b
        ],
        out_specs=pl.BlockSpec((1, tq, C), lambda b, s, qi, ki: (b, qi[s], 0)),
        scratch_shapes=[
            pltpu.VMEM((n_head, tq, 1), jnp.float32),    # running max m
            pltpu.VMEM((n_head, tq, 1), jnp.float32),    # running denom l
            pltpu.VMEM((n_head, tq, dh), jnp.float32),   # output accumulator
        ])

    return pl.pallas_call(
        functools.partial(_flash_block_kernel, n_head=n_head, dh=dh, tq=tq, tk=tk,
                          compute_dtype=compute_dtype),
        out_shape=jax.ShapeDtypeStruct((B, T, C), x.dtype),
        grid_spec=grid_spec,
        compiler_params=cparams,
    )(q_idx, k_idx,
      x, q_hm, k_hm, v_hm,
      wo, p['b_attnproj'],
      p['ln2_g'], p['ln2_b'],
      wfc, p['b_fc'],
      wmp, p['b_mlpproj'])


# ----------------------------- pure-JAX reference ------------------------------

def gpt2_block_ref(x, params, *, n_head, compute_dtype=jnp.float32):
    """compute_dtype=float32 is the exact fp32 module semantics;
    compute_dtype=bfloat16 mirrors the kernel's mixed-precision matmuls."""
    B, T, C = x.shape
    dh = C // n_head
    cd = compute_dtype
    p = params
    scale = 1.0 / math.sqrt(dh)

    wq = (p['w_attn'][:, 0 * C:1 * C] * scale).astype(cd)
    wk = p['w_attn'][:, 1 * C:2 * C].astype(cd)
    wv = p['w_attn'][:, 2 * C:3 * C].astype(cd)
    bq = p['b_attn'][:, 0 * C:1 * C] * scale
    bk = p['b_attn'][:, 1 * C:2 * C]
    bv = p['b_attn'][:, 2 * C:3 * C]

    h = _layernorm(x, p['ln1_g'], p['ln1_b']).astype(cd)
    q = (jnp.einsum('btc,cd->btd', h, wq, preferred_element_type=jnp.float32) + bq).astype(cd)
    k = (jnp.einsum('btc,cd->btd', h, wk, preferred_element_type=jnp.float32) + bk).astype(cd)
    v = (jnp.einsum('btc,cd->btd', h, wv, preferred_element_type=jnp.float32) + bv).astype(cd)
    q = q.reshape(B, T, n_head, dh).transpose(0, 2, 1, 3)
    k = k.reshape(B, T, n_head, dh).transpose(0, 2, 1, 3)
    v = v.reshape(B, T, n_head, dh).transpose(0, 2, 1, 3)
    att = jnp.einsum('bhqd,bhkd->bhqk', q, k, preferred_element_type=jnp.float32)
    mask = jnp.tril(jnp.ones((T, T), bool))
    att = jnp.where(mask[None, None], att, _NEG_BIG)
    att = jax.nn.softmax(att, axis=-1)
    y = jnp.einsum('bhqk,bhkd->bhqd', att.astype(cd), v,
                   preferred_element_type=jnp.float32)
    y = y.transpose(0, 2, 1, 3).reshape(B, T, C)
    y = jnp.einsum('btc,cd->btd', y.astype(cd), p['w_attnproj'].astype(cd),
                   preferred_element_type=jnp.float32) + p['b_attnproj']
    x1 = x + y

    h2 = _layernorm(x1, p['ln2_g'], p['ln2_b']).astype(cd)
    u = jnp.einsum('btc,cd->btd', h2, p['w_fc'].astype(cd),
                   preferred_element_type=jnp.float32) + p['b_fc']
    c0 = math.sqrt(2.0 / math.pi)
    u = 0.5 * u * (1.0 + jnp.tanh(c0 * (u + 0.044715 * u ** 3)))
    m = jnp.einsum('btc,cd->btd', u.astype(cd), p['w_mlpproj'].astype(cd),
                   preferred_element_type=jnp.float32) + p['b_mlpproj']
    return x1 + m


# ------------------------------------ main --------------------------------------

if __name__ == "__main__":
    def make_params(key, C):
        ks = jax.random.split(key, 12)
        n = jax.random.normal
        return {
            'ln1_g': 1.0 + 0.1 * n(ks[0], (1, C), jnp.float32),
            'ln1_b': 0.1 * n(ks[1], (1, C), jnp.float32),
            'w_attn': 0.02 * n(ks[2], (C, 3 * C), jnp.float32),
            'b_attn': 0.01 * n(ks[3], (1, 3 * C), jnp.float32),
            'w_attnproj': 0.02 * n(ks[4], (C, C), jnp.float32),
            'b_attnproj': 0.01 * n(ks[5], (1, C), jnp.float32),
            'ln2_g': 1.0 + 0.1 * n(ks[6], (1, C), jnp.float32),
            'ln2_b': 0.1 * n(ks[7], (1, C), jnp.float32),
            'w_fc': 0.02 * n(ks[8], (C, 4 * C), jnp.float32),
            'b_fc': 0.01 * n(ks[9], (1, 4 * C), jnp.float32),
            'w_mlpproj': 0.02 * n(ks[10], (4 * C, C), jnp.float32),
            'b_mlpproj': 0.01 * n(ks[11], (1, C), jnp.float32),
        }

    key = jax.random.PRNGKey(0)

    # config 1: tiny module-consistent shapes (single q/kv tile).
    # config 2: multi-tile shapes exercising the packed causal grid
    #           (2 q tiles x up to 2 kv tiles -> 3 packed steps per batch element,
    #            including an unmasked below-diagonal tile and masked diagonal tiles).
    for (B, T, C, H) in [(2, 8, 32, 4), (2, 512, 128, 4)]:
        kx, kp = jax.random.split(jax.random.fold_in(key, T))
        params = make_params(kp, C)
        x = jax.random.normal(kx, (B, T, C), jnp.float32)

        out = jax.block_until_ready(gpt2_block(x, params, n_head=H))

        ref_mixed = gpt2_block_ref(x, params, n_head=H, compute_dtype=jnp.bfloat16)
        ref_fp32 = gpt2_block_ref(x, params, n_head=H, compute_dtype=jnp.float32)
        # tight check vs. a reference using the same bf16 matmul operands...
        np.testing.assert_allclose(np.asarray(out), np.asarray(ref_mixed),
                                   rtol=5e-3, atol=5e-3)
        # ...and a looser check vs. the exact fp32 module semantics.
        np.testing.assert_allclose(np.asarray(out), np.asarray(ref_fp32),
                                   rtol=3e-2, atol=3e-2)

    print("KERNEL_OK")
</pallas_src>

<mosaic_0001>
module attributes {stable_mosaic.version = 11 : i64} {
  func.func @_qkv_kernel(%arg0: i32, %arg1: i32, %arg2: memref<1x8x32xf32, #tpu.memory_space<vmem>>, %arg3: memref<1x32xf32, #tpu.memory_space<vmem>>, %arg4: memref<1x32xf32, #tpu.memory_space<vmem>>, %arg5: memref<32x32xbf16, #tpu.memory_space<vmem>>, %arg6: memref<1x32xf32, #tpu.memory_space<vmem>>, %arg7: memref<32x32xbf16, #tpu.memory_space<vmem>>, %arg8: memref<1x32xf32, #tpu.memory_space<vmem>>, %arg9: memref<32x32xbf16, #tpu.memory_space<vmem>>, %arg10: memref<1x32xf32, #tpu.memory_space<vmem>>, %arg11: memref<1x4x8x8xbf16, #tpu.memory_space<vmem>>, %arg12: memref<1x4x8x8xbf16, #tpu.memory_space<vmem>>, %arg13: memref<1x4x8x8xbf16, #tpu.memory_space<vmem>>) attributes {dimension_semantics = [#tpu.dimension_semantics<parallel>, #tpu.dimension_semantics<parallel>], iteration_bounds = array<i64: 2, 1>, scalar_prefetch = 0 : i64, scratch_operands = 0 : i64, tpu.core_type = #tpu.core_type<tc>, window_params = [{transform_indices = @transform_0, window_bounds = array<i64: 1, 8, 32>}, {pipeline_mode = #tpu.pipeline_mode<synchronous>, transform_indices = @transform_1, window_bounds = array<i64: 1, 32>}, {pipeline_mode = #tpu.pipeline_mode<synchronous>, transform_indices = @transform_2, window_bounds = array<i64: 1, 32>}, {pipeline_mode = #tpu.pipeline_mode<synchronous>, transform_indices = @transform_3, window_bounds = array<i64: 32, 32>}, {pipeline_mode = #tpu.pipeline_mode<synchronous>, transform_indices = @transform_4, window_bounds = array<i64: 1, 32>}, {pipeline_mode = #tpu.pipeline_mode<synchronous>, transform_indices = @transform_5, window_bounds = array<i64: 32, 32>}, {pipeline_mode = #tpu.pipeline_mode<synchronous>, transform_indices = @transform_6, window_bounds = array<i64: 1, 32>}, {pipeline_mode = #tpu.pipeline_mode<synchronous>, transform_indices = @transform_7, window_bounds = array<i64: 32, 32>}, {pipeline_mode = #tpu.pipeline_mode<synchronous>, transform_indices = @transform_8, window_bounds = array<i64: 1, 32>}, {transform_indices = @transform_9, window_bounds = array<i64: 1, 4, 8, 8>}, {transform_indices = @transform_10, window_bounds = array<i64: 1, 4, 8, 8>}, {transform_indices = @transform_11, window_bounds = array<i64: 1, 4, 8, 8>}]} {
    %c0 = arith.constant 0 : index
    %c0_0 = arith.constant 0 : index
    %c0_1 = arith.constant 0 : index
    %0 = vector.load %arg2[%c0, %c0_0, %c0_1] : memref<1x8x32xf32, #tpu.memory_space<vmem>>, vector<1x8x32xf32>
    %1 = vector.shape_cast %0 : vector<1x8x32xf32> to vector<8x32xf32>
    %c0_2 = arith.constant 0 : index
    %c0_3 = arith.constant 0 : index
    %2 = vector.load %arg3[%c0_2, %c0_3] : memref<1x32xf32, #tpu.memory_space<vmem>>, vector<1x32xf32>
    %c0_4 = arith.constant 0 : index
    %c0_5 = arith.constant 0 : index
    %3 = vector.load %arg4[%c0_4, %c0_5] : memref<1x32xf32, #tpu.memory_space<vmem>>, vector<1x32xf32>
    %cst = arith.constant dense<0.000000e+00> : vector<8xf32>
    %4 = vector.multi_reduction <add>, %1, %cst [1] : vector<8x32xf32> to vector<8xf32>
    %5 = vector.shape_cast %4 : vector<8xf32> to vector<8x1xf32>
    %cst_6 = arith.constant 3.200000e+01 : f32
    %6 = vector.broadcast %cst_6 : f32 to vector<8x1xf32>
    %7 = arith.divf %5, %6 : vector<8x1xf32>
    %8 = vector.broadcast %7 : vector<8x1xf32> to vector<8x32xf32>
    %9 = arith.subf %1, %8 : vector<8x32xf32>
    %10 = arith.mulf %9, %9 : vector<8x32xf32>
    %cst_7 = arith.constant dense<0.000000e+00> : vector<8xf32>
    %11 = vector.multi_reduction <add>, %10, %cst_7 [1] : vector<8x32xf32> to vector<8xf32>
    %12 = vector.shape_cast %11 : vector<8xf32> to vector<8x1xf32>
    %cst_8 = arith.constant 3.200000e+01 : f32
    %13 = vector.broadcast %cst_8 : f32 to vector<8x1xf32>
    %14 = arith.divf %12, %13 : vector<8x1xf32>
    %15 = vector.broadcast %7 : vector<8x1xf32> to vector<8x32xf32>
    %16 = arith.subf %1, %15 : vector<8x32xf32>
    %cst_9 = arith.constant 9.99999974E-6 : f32
    %17 = vector.broadcast %cst_9 : f32 to vector<8x1xf32>
    %18 = arith.addf %14, %17 : vector<8x1xf32>
    %19 = math.rsqrt %18 : vector<8x1xf32>
    %20 = vector.broadcast %19 : vector<8x1xf32> to vector<8x32xf32>
    %21 = arith.mulf %16, %20 : vector<8x32xf32>
    %22 = vector.broadcast %2 : vector<1x32xf32> to vector<8x32xf32>
    %23 = arith.mulf %21, %22 : vector<8x32xf32>
    %24 = vector.broadcast %3 : vector<1x32xf32> to vector<8x32xf32>
    %25 = arith.addf %23, %24 : vector<8x32xf32>
    %26 = arith.truncf %25 : vector<8x32xf32> to vector<8x32xbf16>
    %c0_10 = arith.constant 0 : index
    %c0_11 = arith.constant 0 : index
    %27 = vector.load %arg5[%c0_10, %c0_11] : memref<32x32xbf16, #tpu.memory_space<vmem>>, vector<32x32xbf16>
    %cst_12 = arith.constant dense<0.000000e+00> : vector<8x32xf32>
    %28 = tpu.matmul %26, %27, %cst_12 {dimension_numbers = #tpu.dot_dimension_numbers<[1], [0], [0], [1], [0, 0, 1, 1], [], []>} : vector<8x32xbf16>, vector<32x32xbf16>, vector<8x32xf32> -> vector<8x32xf32>
    %c0_13 = arith.constant 0 : index
    %c0_14 = arith.constant 0 : index
    %29 = vector.load %arg6[%c0_13, %c0_14] : memref<1x32xf32, #tpu.memory_space<vmem>>, vector<1x32xf32>
    %30 = vector.broadcast %29 : vector<1x32xf32> to vector<8x32xf32>
    %31 = arith.addf %28, %30 : vector<8x32xf32>
    %32 = vector.shape_cast %31 : vector<8x32xf32> to vector<8x4x8xf32>
    %33 = tpu.transpose %32, [1, 0, 2] : vector<8x4x8xf32> -> vector<4x8x8xf32>
    %34 = arith.truncf %33 : vector<4x8x8xf32> to vector<4x8x8xbf16>
    %c0_15 = arith.constant 0 : index
    %c0_16 = arith.constant 0 : index
    %c0_17 = arith.constant 0 : index
    %c0_18 = arith.constant 0 : index
    %35 = vector.load %arg11[%c0_15, %c0_16, %c0_17, %c0_18] : memref<1x4x8x8xbf16, #tpu.memory_space<vmem>>, vector<1x4x8x8xbf16>
    %36 = vector.shape_cast %35 : vector<1x4x8x8xbf16> to vector<4x8x8xbf16>
    %37 = vector.shape_cast %34 : vector<4x8x8xbf16> to vector<1x4x8x8xbf16>
    tpu.vector_store %arg11[%c0_15, %c0_16, %c0_17, %c0_18], %37 {strides = array<i32>} : memref<1x4x8x8xbf16, #tpu.memory_space<vmem>>, vector<1x4x8x8xbf16>,
    %c0_19 = arith.constant 0 : index
    %c0_20 = arith.constant 0 : index
    %38 = vector.load %arg7[%c0_19, %c0_20] : memref<32x32xbf16, #tpu.memory_space<vmem>>, vector<32x32xbf16>
    %cst_21 = arith.constant dense<0.000000e+00> : vector<8x32xf32>
    %39 = tpu.matmul %26, %38, %cst_21 {dimension_numbers = #tpu.dot_dimension_numbers<[1], [0], [0], [1], [0, 0, 1, 1], [], []>} : vector<8x32xbf16>, vector<32x32xbf16>, vector<8x32xf32> -> vector<8x32xf32>
    %c0_22 = arith.constant 0 : index
    %c0_23 = arith.constant 0 : index
    %40 = vector.load %arg8[%c0_22, %c0_23] : memref<1x32xf32, #tpu.memory_space<vmem>>, vector<1x32xf32>
    %41 = vector.broadcast %40 : vector<1x32xf32> to vector<8x32xf32>
    %42 = arith.addf %39, %41 : vector<8x32xf32>
    %43 = vector.shape_cast %42 : vector<8x32xf32> to vector<8x4x8xf32>
    %44 = tpu.transpose %43, [1, 0, 2] : vector<8x4x8xf32> -> vector<4x8x8xf32>
    %45 = arith.truncf %44 : vector<4x8x8xf32> to vector<4x8x8xbf16>
    %c0_24 = arith.constant 0 : index
    %c0_25 = arith.constant 0 : index
    %c0_26 = arith.constant 0 : index
    %c0_27 = arith.constant 0 : index
    %46 = vector.load %arg12[%c0_24, %c0_25, %c0_26, %c0_27] : memref<1x4x8x8xbf16, #tpu.memory_space<vmem>>, vector<1x4x8x8xbf16>
    %47 = vector.shape_cast %46 : vector<1x4x8x8xbf16> to vector<4x8x8xbf16>
    %48 = vector.shape_cast %45 : vector<4x8x8xbf16> to vector<1x4x8x8xbf16>
    tpu.vector_store %arg12[%c0_24, %c0_25, %c0_26, %c0_27], %48 {strides = array<i32>} : memref<1x4x8x8xbf16, #tpu.memory_space<vmem>>, vector<1x4x8x8xbf16>,
    %c0_28 = arith.constant 0 : index
    %c0_29 = arith.constant 0 : index
    %49 = vector.load %arg9[%c0_28, %c0_29] : memref<32x32xbf16, #tpu.memory_space<vmem>>, vector<32x32xbf16>
    %cst_30 = arith.constant dense<0.000000e+00> : vector<8x32xf32>
    %50 = tpu.matmul %26, %49, %cst_30 {dimension_numbers = #tpu.dot_dimension_numbers<[1], [0], [0], [1], [0, 0, 1, 1], [], []>} : vector<8x32xbf16>, vector<32x32xbf16>, vector<8x32xf32> -> vector<8x32xf32>
    %c0_31 = arith.constant 0 : index
    %c0_32 = arith.constant 0 : index
    %51 = vector.load %arg10[%c0_31, %c0_32] : memref<1x32xf32, #tpu.memory_space<vmem>>, vector<1x32xf32>
    %52 = vector.broadcast %51 : vector<1x32xf32> to vector<8x32xf32>
    %53 = arith.addf %50, %52 : vector<8x32xf32>
    %54 = vector.shape_cast %53 : vector<8x32xf32> to vector<8x4x8xf32>
    %55 = tpu.transpose %54, [1, 0, 2] : vector<8x4x8xf32> -> vector<4x8x8xf32>
    %56 = arith.truncf %55 : vector<4x8x8xf32> to vector<4x8x8xbf16>
    %c0_33 = arith.constant 0 : index
    %c0_34 = arith.constant 0 : index
    %c0_35 = arith.constant 0 : index
    %c0_36 = arith.constant 0 : index
    %57 = vector.load %arg13[%c0_33, %c0_34, %c0_35, %c0_36] : memref<1x4x8x8xbf16, #tpu.memory_space<vmem>>, vector<1x4x8x8xbf16>
    %58 = vector.shape_cast %57 : vector<1x4x8x8xbf16> to vector<4x8x8xbf16>
    %59 = vector.shape_cast %56 : vector<4x8x8xbf16> to vector<1x4x8x8xbf16>
    tpu.vector_store %arg13[%c0_33, %c0_34, %c0_35, %c0_36], %59 {strides = array<i32>} : memref<1x4x8x8xbf16, #tpu.memory_space<vmem>>, vector<1x4x8x8xbf16>,
    return
  }
  func.func @transform_0(%arg0: i32, %arg1: i32) -> (i32, i32, i32) {
    %c0_i32 = arith.constant 0 : i32
    %c0_i32_0 = arith.constant 0 : i32
    return %arg0, %arg1, %c0_i32 : i32, i32, i32
  }
  func.func @transform_1(%arg0: i32, %arg1: i32) -> (i32, i32) {
    %c0_i32 = arith.constant 0 : i32
    %c0_i32_0 = arith.constant 0 : i32
    %c0_i32_1 = arith.constant 0 : i32
    return %c0_i32, %c0_i32_0 : i32, i32
  }
  func.func @transform_2(%arg0: i32, %arg1: i32) -> (i32, i32) {
    %c0_i32 = arith.constant 0 : i32
    %c0_i32_0 = arith.constant 0 : i32
    %c0_i32_1 = arith.constant 0 : i32
    return %c0_i32, %c0_i32_0 : i32, i32
  }
  func.func @transform_3(%arg0: i32, %arg1: i32) -> (i32, i32) {
    %c0_i32 = arith.constant 0 : i32
    %c0_i32_0 = arith.constant 0 : i32
    %c0_i32_1 = arith.constant 0 : i32
    return %c0_i32, %c0_i32_0 : i32, i32
  }
  func.func @transform_4(%arg0: i32, %arg1: i32) -> (i32, i32) {
    %c0_i32 = arith.constant 0 : i32
    %c0_i32_0 = arith.constant 0 : i32
    %c0_i32_1 = arith.constant 0 : i32
    return %c0_i32, %c0_i32_0 : i32, i32
  }
  func.func @transform_5(%arg0: i32, %arg1: i32) -> (i32, i32) {
    %c0_i32 = arith.constant 0 : i32
    %c0_i32_0 = arith.constant 0 : i32
    %c0_i32_1 = arith.constant 0 : i32
    return %c0_i32, %c0_i32_0 : i32, i32
  }
  func.func @transform_6(%arg0: i32, %arg1: i32) -> (i32, i32) {
    %c0_i32 = arith.constant 0 : i32
    %c0_i32_0 = arith.constant 0 : i32
    %c0_i32_1 = arith.constant 0 : i32
    return %c0_i32, %c0_i32_0 : i32, i32
  }
  func.func @transform_7(%arg0: i32, %arg1: i32) -> (i32, i32) {
    %c0_i32 = arith.constant 0 : i32
    %c0_i32_0 = arith.constant 0 : i32
    %c0_i32_1 = arith.constant 0 : i32
    return %c0_i32, %c0_i32_0 : i32, i32
  }
  func.func @transform_8(%arg0: i32, %arg1: i32) -> (i32, i32) {
    %c0_i32 = arith.constant 0 : i32
    %c0_i32_0 = arith.constant 0 : i32
    %c0_i32_1 = arith.constant 0 : i32
    return %c0_i32, %c0_i32_0 : i32, i32
  }
  func.func @transform_9(%arg0: i32, %arg1: i32) -> (i32, i32, i32, i32) {
    %c0_i32 = arith.constant 0 : i32
    %c0_i32_0 = arith.constant 0 : i32
    %c0_i32_1 = arith.constant 0 : i32
    return %arg0, %c0_i32, %arg1, %c0_i32_0 : i32, i32, i32, i32
  }
  func.func @transform_10(%arg0: i32, %arg1: i32) -> (i32, i32, i32, i32) {
    %c0_i32 = arith.constant 0 : i32
    %c0_i32_0 = arith.constant 0 : i32
    %c0_i32_1 = arith.constant 0 : i32
    return %arg0, %c0_i32, %arg1, %c0_i32_0 : i32, i32, i32, i32
  }
  func.func @transform_11(%arg0: i32, %arg1: i32) -> (i32, i32, i32, i32) {
    %c0_i32 = arith.constant 0 : i32
    %c0_i32_0 = arith.constant 0 : i32
    %c0_i32_1 = arith.constant 0 : i32
    return %arg0, %c0_i32, %arg1, %c0_i32_0 : i32, i32, i32, i32
  }
}

</mosaic_0001>

<llo_original>
// kernel: tpu_custom_call.1
$region0: #{tpu_custom_call.1}
  #allocation0 [shape = 'u32[]', space=smem, size = 0x4, offset = 0x4, fixed_abs, tag = 'smem constant byte address 0x4 - core index']
  #allocation1 [shape = 'u32[144,128]{1,0:T(1,128)}', space=vmem, size = 0x12000, scoped, tag = 'internal scratch']
  %s0 = inlined_call_operand.hbm [shape: f32[2,8,32], index: 0, kind: input, shape index: {}]
  %s1 = inlined_call_operand.vmem [shape: f32[1,32], index: 1, kind: input, shape index: {}]
  %s2 = inlined_call_operand.vmem [shape: f32[1,32], index: 2, kind: input, shape index: {}]
  %s3 = inlined_call_operand.hbm [shape: bf16[32,32], index: 3, kind: input, shape index: {}]
  %s4 = inlined_call_operand.vmem [shape: f32[1,32], index: 4, kind: input, shape index: {}]
  %s5 = inlined_call_operand.hbm [shape: bf16[32,32], index: 5, kind: input, shape index: {}]
  %s6 = inlined_call_operand.vmem [shape: f32[1,32], index: 6, kind: input, shape index: {}]
  %s7 = inlined_call_operand.hbm [shape: bf16[32,32], index: 7, kind: input, shape index: {}]
  %s8 = inlined_call_operand.vmem [shape: f32[1,32], index: 8, kind: input, shape index: {}]
  %s9 = inlined_call_operand.hbm [shape: bf16[2,4,8,8], index: 9, kind: output, shape index: {0}]
  %s10 = inlined_call_operand.hbm [shape: bf16[2,4,8,8], index: 10, kind: output, shape index: {1}]
  %s11 = inlined_call_operand.hbm [shape: bf16[2,4,8,8], index: 11, kind: output, shape index: {2}]
  %12 = xla_tuple %s9, %s10, %s11
  %s13 = sld [smem:[#allocation0]]
  $region101: #{tpu_custom_call.1} parent=0
    _
  %s15 = ssub.s32 1, %s13
  %s16 = scalar_select 0, %s15, %s13
  $region1: #{tpu_custom_call.1} parent=0
    #allocation2 [shape = 'u8[8192]{0}', space=vmem, size = 0x2000, scoped, tag = 'input window, operand 0']
    #allocation3 [shape = 's32[2]{0}', space=sflag, size = 0x8, scoped, tag = 'scoped memory for tpu_custom_call.1']
    #allocation4 [shape = 's32[2]{0}', space=sflag, size = 0x8, scoped, tag = 'scoped memory for tpu_custom_call.1']
    #allocation5 [shape = 'u8[8192]{0}', space=vmem, size = 0x2000, scoped, tag = 'input window, operand 3, single buffered']
    #allocation6 [shape = 's32[1]{0}', space=sflag, size = 0x4, scoped, tag = 'scoped memory for tpu_custom_call.1']
    #allocation7 [shape = 'u8[8192]{0}', space=vmem, size = 0x2000, scoped, tag = 'input window, operand 5, single buffered']
    #allocation8 [shape = 'u8[8192]{0}', space=vmem, size = 0x2000, scoped, tag = 'input window, operand 7, single buffered']
    #allocation9 [shape = 's32[1]{0}', space=sflag, size = 0x4, scoped, tag = 'scoped memory for tpu_custom_call.1']
    #allocation10 [shape = 'u8[16384]{0}', space=vmem, size = 0x4000, scoped, tag = 'output window, operand 0']
    #allocation11 [shape = 'u8[16384]{0}', space=vmem, size = 0x4000, scoped, tag = 'output window, operand 1']
    #allocation12 [shape = 's32[2]{0}', space=sflag, size = 0x8, scoped, tag = 'scoped memory for tpu_custom_call.1']
    #allocation13 [shape = 'u8[16384]{0}', space=vmem, size = 0x4000, scoped, tag = 'output window, operand 2']
    %17 = vsyncpa [#allocation3], 0
    %s18 = scalar_lea.sflag [#allocation3], 1
    %19 = vsyncpa %s18, 0
    %20 = vsyncpa [#allocation6], 0
    %21 = vsyncpa [#allocation9], 0
    %22 = vsyncpa [#allocation4], 0
    %s23 = scalar_lea.sflag [#allocation4], 1
    %24 = vsyncpa %s23, 0
    %25 = vsyncpa [#allocation12], 0
    %s26 = scalar_lea.sflag [#allocation12], 1
    %27 = vsyncpa %s26, 0
    loop: start=0, step=1, limit=4
    $region2: #{tpu_custom_call.1} parent=1 // loop_pre_header
      _
    $region3: #{tpu_custom_call.1} parent=1 // loop_header
      %s29 = sphi 0, %s33
      %p30 = scmp.ge.s32.totalorder %s29, 4
      %s36 = sphi 0, %s48
      %s37 = sphi 0, %s44
      %s38 = sphi 0, %s36
      %s39 = sphi 0, %s37
      %s40 = sphi 0, %s38
      %s41 = sphi 0, %s39
      %s53 = sphi 0, %s55
      %s56 = sphi 0, %s53
      %s57 = sphi 0, %s56
      %s73 = sphi 0, %s57
      %s77 = sphi 0, %s77
      %s79 = sphi 0, %s77
      %s80 = sphi 0, %s79
      %s94 = sphi 0, %s80
      %s98 = sphi 0, %s98
      %s100 = sphi 0, %s98
      %s101 = sphi 0, %s100
      %s115 = sphi 0, %s101
      %s119 = sphi 0, %s119
      %s121 = sphi 0, %s119
      %s122 = sphi 0, %s121
      %s136 = sphi 0, %s122
      %s140 = sphi 0, %s140
      %s142 = sphi 0, %s140
      %s143 = sphi 0, %s142
      %s157 = sphi 0, %s143
      %s161 = sphi 0, %s161
      %s163 = sphi 0, %s161
      %s164 = sphi 0, %s163
      %s178 = sphi 0, %s164
      %s182 = sphi 0, %s182
      %s184 = sphi 0, %s182
      %s185 = sphi 0, %s184
      %s199 = sphi 0, %s185
      %s203 = sphi 0, %s203
      %s205 = sphi 0, %s203
      %s206 = sphi 0, %s205
      %s220 = sphi 0, %s206
      %s224 = sphi 0, %s224
      %s226 = sphi 0, %s224
      %s227 = sphi 0, %s226
      %s241 = sphi 0, %s227
      %s249 = sphi 0, %s251
      %s252 = sphi 0, %s249
      %s253 = sphi 0, %s252
      %s269 = sphi 0, %s253
      %s277 = sphi 0, %s279
      %s280 = sphi 0, %s277
      %s281 = sphi 0, %s280
      %s297 = sphi 0, %s281
      %s305 = sphi 0, %s307
      %s308 = sphi 0, %s305
      %s309 = sphi 0, %s308
      %s325 = sphi 0, %s309
    $region4: #{tpu_custom_call.1} parent=1 // loop_header_branch
      %32 = sbr.rel (%p30) target = $region8
    $region5: #{tpu_custom_call.1} parent=1 // loop_body
      %s34 = ssub.s32 %s29, 1
      %s35 = ssub.s32 %s29, 2
      %s42 = sadd.s32 1, %s37
      %p43 = scmp.ge.s32.totalorder %s42, 1
      %s44 = scalar_select %p43, 0, %s42
      %s45 = sadd.s32 1, %s36
      %s46 = scalar_select %p43, %s45, %s36
      %p47 = scmp.ge.s32.totalorder %s46, 2
      %s48 = scalar_select %p47, 0, %s46
      %s49 = ssub.s32 %s36, %s48
      %s50 = ssub.s32 %s37, %s44
      %s51 = sor.u32 %s49, %s50
      %p52 = scmp.eq.s32.totalorder %s51, 0
      %s54 = sadd.s32 %s53, 1
      %s55 = scalar_select %p52, %s53, %s54
      %p58 = pneg %p52
      %p59 = scmp.eq.s32.totalorder %s29, 1
      %p60 = por %p58, %p59
      %p61 = scmp.ne.s32.totalorder %s53, %s56
      %p62 = scmp.eq.s32.totalorder %s29, 0
      %p63 = por %p61, %p62
      %p64 = scmp.ne.s32.totalorder %s53, %s56
      %p65 = scmp.eq.s32.totalorder %s34, 1
      %p66 = por %p64, %p65
      %p67 = scmp.ne.s32.totalorder %s56, %s57
      %p68 = scmp.eq.s32.totalorder %s34, 0
      %p69 = por %p67, %p68
      %p70 = scmp.ne.s32.totalorder %s56, %s57
      %p71 = scmp.eq.s32.totalorder %s35, 1
      %p72 = por %p70, %p71
      %p74 = scmp.ne.s32.totalorder %s57, %s73
      %p75 = scmp.eq.s32.totalorder %s35, 0
      %p76 = por %p74, %p75
      %s78 = sadd.s32 %s77, 1
      %p81 = scmp.eq.s32.totalorder %s29, 1
      %p82 = scmp.ne.s32.totalorder %s77, %s79
      %p83 = scmp.eq.s32.totalorder %s29, 0
      %p84 = por %p82, %p83
      %p85 = scmp.ne.s32.totalorder %s77, %s79
      %p86 = scmp.eq.s32.totalorder %s34, 1
      %p87 = por %p85, %p86
      %p88 = scmp.ne.s32.totalorder %s79, %s80
      %p89 = scmp.eq.s32.totalorder %s34, 0
      %p90 = por %p88, %p89
      %p91 = scmp.ne.s32.totalorder %s79, %s80
      %p92 = scmp.eq.s32.totalorder %s35, 1
      %p93 = por %p91, %p92
      %p95 = scmp.ne.s32.totalorder %s80, %s94
      %p96 = scmp.eq.s32.totalorder %s35, 0
      %p97 = por %p95, %p96
      %s99 = sadd.s32 %s98, 1
      %p102 = scmp.eq.s32.totalorder %s29, 1
      %p103 = scmp.ne.s32.totalorder %s98, %s100
      %p104 = scmp.eq.s32.totalorder %s29, 0
      %p105 = por %p103, %p104
      %p106 = scmp.ne.s32.totalorder %s98, %s100
      %p107 = scmp.eq.s32.totalorder %s34, 1
      %p108 = por %p106, %p107
      %p109 = scmp.ne.s32.totalorder %s100, %s101
      %p110 = scmp.eq.s32.totalorder %s34, 0
      %p111 = por %p109, %p110
      %p112 = scmp.ne.s32.totalorder %s100, %s101
      %p113 = scmp.eq.s32.totalorder %s35, 1
      %p114 = por %p112, %p113
      %p116 = scmp.ne.s32.totalorder %s101, %s115
      %p117 = scmp.eq.s32.totalorder %s35, 0
      %p118 = por %p116, %p117
      %s120 = sadd.s32 %s119, 1
      %p123 = scmp.eq.s32.totalorder %s29, 1
      %p124 = scmp.ne.s32.totalorder %s119, %s121
      %p125 = scmp.eq.s32.totalorder %s29, 0
      %p126 = por %p124, %p125
      %p127 = scmp.ne.s32.totalorder %s119, %s121
      %p128 = scmp.eq.s32.totalorder %s34, 1
      %p129 = por %p127, %p128
      %p130 = scmp.ne.s32.totalorder %s121, %s122
      %p131 = scmp.eq.s32.totalorder %s34, 0
      %p132 = por %p130, %p131
      %p133 = scmp.ne.s32.totalorder %s121, %s122
      %p134 = scmp.eq.s32.totalorder %s35, 1
      %p135 = por %p133, %p134
      %p137 = scmp.ne.s32.totalorder %s122, %s136
      %p138 = scmp.eq.s32.totalorder %s35, 0
      %p139 = por %p137, %p138
      %s141 = sadd.s32 %s140, 1
      %p144 = scmp.eq.s32.totalorder %s29, 1
      %p145 = scmp.ne.s32.totalorder %s140, %s142
      %p146 = scmp.eq.s32.totalorder %s29, 0
      %p147 = por %p145, %p146
      %p148 = scmp.ne.s32.totalorder %s140, %s142
      %p149 = scmp.eq.s32.totalorder %s34, 1
      %p150 = por %p148, %p149
      %p151 = scmp.ne.s32.totalorder %s142, %s143
      %p152 = scmp.eq.s32.totalorder %s34, 0
      %p153 = por %p151, %p152
      %p154 = scmp.ne.s32.totalorder %s142, %s143
      %p155 = scmp.eq.s32.totalorder %s35, 1
      %p156 = por %p154, %p155
      %p158 = scmp.ne.s32.totalorder %s143, %s157
      %p159 = scmp.eq.s32.totalorder %s35, 0
      %p160 = por %p158, %p159
      %s162 = sadd.s32 %s161, 1
      %p165 = scmp.eq.s32.totalorder %s29, 1
      %p166 = scmp.ne.s32.totalorder %s161, %s163
      %p167 = scmp.eq.s32.totalorder %s29, 0
      %p168 = por %p166, %p167
      %p169 = scmp.ne.s32.totalorder %s161, %s163
      %p170 = scmp.eq.s32.totalorder %s34, 1
      %p171 = por %p169, %p170
      %p172 = scmp.ne.s32.totalorder %s163, %s164
      %p173 = scmp.eq.s32.totalorder %s34, 0
      %p174 = por %p172, %p173
      %p175 = scmp.ne.s32.totalorder %s163, %s164
      %p176 = scmp.eq.s32.totalorder %s35, 1
      %p177 = por %p175, %p176
      %p179 = scmp.ne.s32.totalorder %s164, %s178
      %p180 = scmp.eq.s32.totalorder %s35, 0
      %p181 = por %p179, %p180
      %s183 = sadd.s32 %s182, 1
      %p186 = scmp.eq.s32.totalorder %s29, 1
      %p187 = scmp.ne.s32.totalorder %s182, %s184
      %p188 = scmp.eq.s32.totalorder %s29, 0
      %p189 = por %p187, %p188
      %p190 = scmp.ne.s32.totalorder %s182, %s184
      %p191 = scmp.eq.s32.totalorder %s34, 1
      %p192 = por %p190, %p191
      %p193 = scmp.ne.s32.totalorder %s184, %s185
      %p194 = scmp.eq.s32.totalorder %s34, 0
      %p195 = por %p193, %p194
      %p196 = scmp.ne.s32.totalorder %s184, %s185
      %p197 = scmp.eq.s32.totalorder %s35, 1
      %p198 = por %p196, %p197
      %p200 = scmp.ne.s32.totalorder %s185, %s199
      %p201 = scmp.eq.s32.totalorder %s35, 0
      %p202 = por %p200, %p201
      %s204 = sadd.s32 %s203, 1
      %p207 = scmp.eq.s32.totalorder %s29, 1
      %p208 = scmp.ne.s32.totalorder %s203, %s205
      %p209 = scmp.eq.s32.totalorder %s29, 0
      %p210 = por %p208, %p209
      %p211 = scmp.ne.s32.totalorder %s203, %s205
      %p212 = scmp.eq.s32.totalorder %s34, 1
      %p213 = por %p211, %p212
      %p214 = scmp.ne.s32.totalorder %s205, %s206
      %p215 = scmp.eq.s32.totalorder %s34, 0
      %p216 = por %p214, %p215
      %p217 = scmp.ne.s32.totalorder %s205, %s206
      %p218 = scmp.eq.s32.totalorder %s35, 1
      %p219 = por %p217, %p218
      %p221 = scmp.ne.s32.totalorder %s206, %s220
      %p222 = scmp.eq.s32.totalorder %s35, 0
      %p223 = por %p221, %p222
      %s225 = sadd.s32 %s224, 1
      %p228 = scmp.eq.s32.totalorder %s29, 1
      %p229 = scmp.ne.s32.totalorder %s224, %s226
      %p230 = scmp.eq.s32.totalorder %s29, 0
      %p231 = por %p229, %p230
      %p232 = scmp.ne.s32.totalorder %s224, %s226
      %p233 = scmp.eq.s32.totalorder %s34, 1
      %p234 = por %p232, %p233
      %p235 = scmp.ne.s32.totalorder %s226, %s227
      %p236 = scmp.eq.s32.totalorder %s34, 0
      %p237 = por %p235, %p236
      %p238 = scmp.ne.s32.totalorder %s226, %s227
      %p239 = scmp.eq.s32.totalorder %s35, 1
      %p240 = por %p238, %p239
      %p242 = scmp.ne.s32.totalorder %s227, %s241
      %p243 = scmp.eq.s32.totalorder %s35, 0
      %p244 = por %p242, %p243
      %s245 = ssub.s32 %s36, %s48
      %s246 = ssub.s32 %s37, %s44
      %s247 = sor.u32 %s245, %s246
      %p248 = scmp.eq.s32.totalorder %s247, 0
      %s250 = sadd.s32 %s249, 1
      %s251 = scalar_select %p248, %s249, %s250
      %p254 = pneg %p248
      %p255 = scmp.eq.s32.totalorder %s29, 1
      %p256 = por %p254, %p255
      %p257 = scmp.ne.s32.totalorder %s249, %s252
      %p258 = scmp.eq.s32.totalorder %s29, 0
      %p259 = por %p257, %p258
      %p260 = scmp.ne.s32.totalorder %s249, %s252
      %p261 = scmp.eq.s32.totalorder %s34, 1
      %p262 = por %p260, %p261
      %p263 = scmp.ne.s32.totalorder %s252, %s253
      %p264 = scmp.eq.s32.totalorder %s34, 0
      %p265 = por %p263, %p264
      %p266 = scmp.ne.s32.totalorder %s252, %s253
      %p267 = scmp.eq.s32.totalorder %s35, 1
      %p268 = por %p266, %p267
      %p270 = scmp.ne.s32.totalorder %s253, %s269
      %p271 = scmp.eq.s32.totalorder %s35, 0
      %p272 = por %p270, %p271
      %s273 = ssub.s32 %s36, %s48
      %s274 = ssub.s32 %s37, %s44
      %s275 = sor.u32 %s273, %s274
      %p276 = scmp.eq.s32.totalorder %s275, 0
      %s278 = sadd.s32 %s277, 1
      %s279 = scalar_select %p276, %s277, %s278
      %p282 = pneg %p276
      %p283 = scmp.eq.s32.totalorder %s29, 1
      %p284 = por %p282, %p283
      %p285 = scmp.ne.s32.totalorder %s277, %s280
      %p286 = scmp.eq.s32.totalorder %s29, 0
      %p287 = por %p285, %p286
      %p288 = scmp.ne.s32.totalorder %s277, %s280
      %p289 = scmp.eq.s32.totalorder %s34, 1
      %p290 = por %p288, %p289
      %p291 = scmp.ne.s32.totalorder %s280, %s281
      %p292 = scmp.eq.s32.totalorder %s34, 0
      %p293 = por %p291, %p292
      %p294 = scmp.ne.s32.totalorder %s280, %s281
      %p295 = scmp.eq.s32.totalorder %s35, 1
      %p296 = por %p294, %p295
      %p298 = scmp.ne.s32.totalorder %s281, %s297
      %p299 = scmp.eq.s32.totalorder %s35, 0
      %p300 = por %p298, %p299
      %s301 = ssub.s32 %s36, %s48
      %s302 = ssub.s32 %s37, %s44
      %s303 = sor.u32 %s301, %s302
      %p304 = scmp.eq.s32.totalorder %s303, 0
      %s306 = sadd.s32 %s305, 1
      %s307 = scalar_select %p304, %s305, %s306
      %p310 = pneg %p304
      %p311 = scmp.eq.s32.totalorder %s29, 1
      %p312 = por %p310, %p311
      %p313 = scmp.ne.s32.totalorder %s305, %s308
      %p314 = scmp.eq.s32.totalorder %s29, 0
      %p315 = por %p313, %p314
      %p316 = scmp.ne.s32.totalorder %s305, %s308
      %p317 = scmp.eq.s32.totalorder %s34, 1
      %p318 = por %p316, %p317
      %p319 = scmp.ne.s32.totalorder %s308, %s309
      %p320 = scmp.eq.s32.totalorder %s34, 0
      %p321 = por %p319, %p320
      %p322 = scmp.ne.s32.totalorder %s308, %s309
      %p323 = scmp.eq.s32.totalorder %s35, 1
      %p324 = por %p322, %p323
      %p326 = scmp.ne.s32.totalorder %s309, %s325
      %p327 = scmp.eq.s32.totalorder %s35, 0
      %p328 = por %p326, %p327
      %p329 = scmp.le.s32.totalorder 1, %s29
      %p330 = scmp.lt.s32.totalorder %s29, 3
      %p331 = pnand %p329, %p330
      %p332 = pneg %p331
      // Predicated region
      $region9: #{tpu_custom_call.1} parent=5 // pred_check
        _
      $region10: #{tpu_custom_call.1} parent=5 // pred_check_branch
        %334 = sbr.rel (%p331) target = $region12
      $region11: #{tpu_custom_call.1} parent=5 // pred_region
        %s335 = ssub.s32 %s29, 1
        // Predicated region
        $region13: #{tpu_custom_call.1} parent=11 // pred_check
          %p336 = pneg %p90
        $region14: #{tpu_custom_call.1} parent=11 // pred_check_branch
          %338 = sbr.rel (%p336) target = $region16
        $region15: #{tpu_custom_call.1} parent=11 // pred_region
          _
        $region16: #{tpu_custom_call.1} parent=11 // pred_fallthru
          _
        // Predicated region
        $region17: #{tpu_custom_call.1} parent=11 // pred_check
          %p339 = pneg %p111
        $region18: #{tpu_custom_call.1} parent=11 // pred_check_branch
          %341 = sbr.rel (%p339) target = $region20
        $region19: #{tpu_custom_call.1} parent=11 // pred_region
          _
        $region20: #{tpu_custom_call.1} parent=11 // pred_fallthru
          _
        // Predicated region
        $region21: #{tpu_custom_call.1} parent=11 // pred_check
          %p342 = pneg %p132
        $region22: #{tpu_custom_call.1} parent=11 // pred_check_branch
          %344 = sbr.rel (%p342) target = $region24
        $region23: #{tpu_custom_call.1} parent=11 // pred_region
          %s346 = ssub.s32 256, 256
          %347 = vsyncadd [#allocation6], %s346
          %s348 = sshll.u32 [#allocation5], 4
          %s349 = int_to_ptr.vmem [resolvable:$true] %s348
          %354 = dma.hbm_to_vmem [thread:$0]  %s3, 256, %s349, [#allocation6], 64, 64, 4
        $region24: #{tpu_custom_call.1} parent=11 // pred_fallthru
          _
        // Predicated region
        $region25: #{tpu_custom_call.1} parent=11 // pred_check
          %p355 = pneg %p153
        $region26: #{tpu_custom_call.1} parent=11 // pred_check_branch
          %357 = sbr.rel (%p355) target = $region28
        $region27: #{tpu_custom_call.1} parent=11 // pred_region
          _
        $region28: #{tpu_custom_call.1} parent=11 // pred_fallthru
          _
        // Predicated region
        $region29: #{tpu_custom_call.1} parent=11 // pred_check
          %p358 = pneg %p174
        $region30: #{tpu_custom_call.1} parent=11 // pred_check_branch
          %360 = sbr.rel (%p358) target = $region32
        $region31: #{tpu_custom_call.1} parent=11 // pred_region
          %s362 = ssub.s32 256, 256
          %363 = vsyncadd [#allocation6], %s362
          %s364 = sshll.u32 [#allocation7], 4
          %s365 = int_to_ptr.vmem [resolvable:$true] %s364
          %370 = dma.hbm_to_vmem [thread:$0]  %s5, 256, %s365, [#allocation6], 64, 64, 4
        $region32: #{tpu_custom_call.1} parent=11 // pred_fallthru
          _
        // Predicated region
        $region33: #{tpu_custom_call.1} parent=11 // pred_check
          %p371 = pneg %p195
        $region34: #{tpu_custom_call.1} parent=11 // pred_check_branch
          %373 = sbr.rel (%p371) target = $region36
        $region35: #{tpu_custom_call.1} parent=11 // pred_region
          _
        $region36: #{tpu_custom_call.1} parent=11 // pred_fallthru
          _
        // Predicated region
        $region37: #{tpu_custom_call.1} parent=11 // pred_check
          %p374 = pneg %p216
        $region38: #{tpu_custom_call.1} parent=11 // pred_check_branch
          %376 = sbr.rel (%p374) target = $region40
        $region39: #{tpu_custom_call.1} parent=11 // pred_region
          %s378 = ssub.s32 256, 256
          %379 = vsyncadd [#allocation9], %s378
          %s380 = sshll.u32 [#allocation8], 4
          %s381 = int_to_ptr.vmem [resolvable:$true] %s380
          %386 = dma.hbm_to_vmem [thread:$0]  %s7, 256, %s381, [#allocation9], 64, 64, 4
        $region40: #{tpu_custom_call.1} parent=11 // pred_fallthru
          _
        // Predicated region
        $region41: #{tpu_custom_call.1} parent=11 // pred_check
          %p387 = pneg %p237
        $region42: #{tpu_custom_call.1} parent=11 // pred_check_branch
          %389 = sbr.rel (%p387) target = $region44
        $region43: #{tpu_custom_call.1} parent=11 // pred_region
          _
        $region44: #{tpu_custom_call.1} parent=11 // pred_fallthru
          _
      $region12: #{tpu_custom_call.1} parent=5 // pred_fallthru
        _
      %p390 = scmp.lt.s32.totalorder %s29, 2
      // Predicated region
      $region45: #{tpu_custom_call.1} parent=5 // pred_check
        %p391 = pneg %p390
      $region46: #{tpu_custom_call.1} parent=5 // pred_check_branch
        %393 = sbr.rel (%p391) target = $region48
      $region47: #{tpu_custom_call.1} parent=5 // pred_region
        // Predicated region
        $region49: #{tpu_custom_call.1} parent=47 // pred_check
          %p394 = pneg %p63
        $region50: #{tpu_custom_call.1} parent=47 // pred_check_branch
          %396 = sbr.rel (%p394) target = $region52
        $region51: #{tpu_custom_call.1} parent=47 // pred_region
          %s397 = sand.u32 %s53, 1
          %s398 = scalar_lea.sflag [#allocation3], %s397
          %s399 = sand.u32 %s53, 1
          %s400 = smul.addr %s399, 8
          %s401 = scalar_lea.vmem [#allocation2], %s400
          %s403 = ssub.s32 128, 128
          %404 = vsyncadd %s398, %s403
          %s405 = sadd.s32 %s37, %s36
          %s406 = smul.addr %s405, 128
          %s407 = scalar_lea.hbm %s0, %s406
          %s409 = sshll.u32 %s401, 4
          %s410 = int_to_ptr.vmem [resolvable:$true] %s409
          %412 = dma.hbm_to_vmem [thread:$0]  %s407, 128, %s410, %s398
        $region52: #{tpu_custom_call.1} parent=47 // pred_fallthru
          _
      $region48: #{tpu_custom_call.1} parent=5 // pred_fallthru
        _
      %p413 = scmp.le.s32.totalorder 1, %s29
      %p414 = scmp.lt.s32.totalorder %s29, 3
      %p415 = pnand %p413, %p414
      %p416 = pneg %p415
      // Predicated region
      $region53: #{tpu_custom_call.1} parent=5 // pred_check
        _
      $region54: #{tpu_custom_call.1} parent=5 // pred_check_branch
        %418 = sbr.rel (%p415) target = $region56
      $region55: #{tpu_custom_call.1} parent=5 // pred_region
        %s419 = ssub.s32 %s29, 1
        %s420 = sand.u32 %s56, 1
        %s421 = scalar_lea.sflag [#allocation3], %s420
        %s422 = sand.u32 %s56, 1
        %s423 = smul.addr %s422, 8
        %s424 = scalar_lea.vmem [#allocation2], %s423
        // Predicated region
        $region57: #{tpu_custom_call.1} parent=55 // pred_check
          %p425 = pneg %p69
        $region58: #{tpu_custom_call.1} parent=55 // pred_check_branch
          %427 = sbr.rel (%p425) target = $region60
        $region59: #{tpu_custom_call.1} parent=55 // pred_region
          %428 = dma.done %s421, 128
        $region60: #{tpu_custom_call.1} parent=55 // pred_fallthru
          _
        // Predicated region
        $region61: #{tpu_custom_call.1} parent=55 // pred_check
          %p429 = pneg %p132
        $region62: #{tpu_custom_call.1} parent=55 // pred_check_branch
          %431 = sbr.rel (%p429) target = $region64
        $region63: #{tpu_custom_call.1} parent=55 // pred_region
          %432 = dma.done [#allocation6], 256
        $region64: #{tpu_custom_call.1} parent=55 // pred_fallthru
          _
        // Predicated region
        $region65: #{tpu_custom_call.1} parent=55 // pred_check
          %p433 = pneg %p174
        $region66: #{tpu_custom_call.1} parent=55 // pred_check_branch
          %435 = sbr.rel (%p433) target = $region68
        $region67: #{tpu_custom_call.1} parent=55 // pred_region
          %436 = dma.done [#allocation6], 256
        $region68: #{tpu_custom_call.1} parent=55 // pred_fallthru
          _
        // Predicated region
        $region69: #{tpu_custom_call.1} parent=55 // pred_check
          %p437 = pneg %p216
        $region70: #{tpu_custom_call.1} parent=55 // pred_check_branch
          %439 = sbr.rel (%p437) target = $region72
        $region71: #{tpu_custom_call.1} parent=55 // pred_region
          %440 = dma.done [#allocation9], 256
        $region72: #{tpu_custom_call.1} parent=55 // pred_fallthru
          _
        %s441 = sand.u32 %s56, 1
        %s442 = scalar_lea.sflag [#allocation3], %s441
        %s443 = sand.u32 %s56, 1
        %s444 = smul.addr %s443, 8
        %s445 = scalar_lea.vmem [#allocation2], %s444
        %p446 = pneg %p69
        %p447 = pneg %p66
        %p448 = pneg %p90
        %p449 = pneg %p87
        %p450 = pneg %p111
        %p451 = pneg %p108
        %p452 = pneg %p132
        %p453 = pneg %p129
        %p454 = pneg %p153
        %p455 = pneg %p150
        %p456 = pneg %p174
        %p457 = pneg %p171
        %p458 = pneg %p195
        %p459 = pneg %p192
        %p460 = pneg %p216
        %p461 = pneg %p213
        %p462 = pneg %p237
        %p463 = pneg %p234
        %p464 = pneg %p265
        %p465 = pneg %p262
        %s466 = sand.u32 %s252, 1
        %s467 = scalar_lea.sflag [#allocation4], %s466
        %s468 = sand.u32 %s252, 1
        %s469 = smul.addr %s468, 16
        %s470 = scalar_lea.vmem [#allocation10], %s469
        %p471 = pneg %p293
        %p472 = pneg %p290
        %s473 = sand.u32 %s34, 1
        %s474 = scalar_lea.sflag [#allocation12], %s473
        %s475 = sand.u32 %s280, 1
        %s476 = smul.addr %s475, 16
        %s477 = scalar_lea.vmem [#allocation11], %s476
        %p478 = pneg %p321
        %p479 = pneg %p318
        %s480 = sand.u32 %s34, 1
        %s481 = scalar_lea.sflag [#allocation12], %s480
        %s482 = sand.u32 %s308, 1
        %s483 = smul.addr %s482, 16
        %s484 = scalar_lea.vmem [#allocation13], %s483
        %v486 = vld [vmem:[%s424] sm:$0xff]
        %v487 = vld [vmem:[%s1] sm:$0x1]
        %v488 = vld [vmem:[%s2] sm:$0x1]
        %vm489 = vcmask 261120
        %v490 = vsel %vm489, %v486, 0.0
        %491 = vadd.xlane.f32.xlu0 %v490
        %v492 = vpop.xlane.xlu0 %491
        %v493 = vrcp.pop 32.0
        %v494 = vmul.f32 %v492, %v493
        %v495 = vsub.f32 %v486, %v494
        %v496 = vmul.f32 %v495, %v495
        %v497 = vsel %vm489, %v496, 0.0
        %498 = vadd.xlane.f32.xlu0 %v497
        %v499 = vpop.xlane.xlu0 %498
        %v500 = vmul.f32 %v499, %v493
        %v501 = vadd.f32 %v500, 1e-05
        %v502 = vrsqrt.pop %v501
        %v503 = vmul.f32 %v495, %v502
        %v505 = vlaneseq
        %v506 = vshrl.u32 %v505, 7
        %v507 = vsub.s32 0, %v506
        %v508 = vrot.slane %v487, %v507
        %v510 = vmul.f32 %v503, %v508
        %v512 = vlaneseq
        %v513 = vshrl.u32 %v512, 7
        %v514 = vsub.s32 0, %v513
        %v515 = vrot.slane %v488, %v514
        %v517 = vadd.f32 %v510, %v515
        %v518 = vpack.c.bf16 %v517, %v517
        %v519 = vld [vmem:[#allocation5] sm:$0xf]
        %v520 = vld [vmem:[#allocation5 + $0x4] sm:$0xf]
        %v521 = vld [vmem:[#allocation5 + $0x8] sm:$0xf]
        %v522 = vld [vmem:[#allocation5 + $0xc] sm:$0xf]
        %v523 = vld [vmem:[%s4] sm:$0x1]
        %v525 = vlaneseq
        %v526 = vshrl.u32 %v525, 7
        %v527 = vsub.s32 0, %v526
        %v528 = vrot.slane %v523, %v527
        %v534 = vunpack.c.l.b16 %v519
        %v535 = vunpack.c.l.b16 %v520
        %v536 = vunpack.c.l.b16 %v521
        %v537 = vunpack.c.l.b16 %v522
        %v538 = vpack.c.b16 %v535, %v534
        %v539 = vpack.c.b16 %v537, %v536
        %v543 = vsel %vm489, %v518, 0
        %545 = vmatprep.subr.bf16.mxu0 0
        %546 = vmatpush1.bf16.msra.mxu0 0
        %547 = vmatprep.subr.bf16.mxu0 0
        %548 = vmatpush1.bf16.msra.mxu0 0
        %549 = vmatprep.subr.bf16.mxu0 0
        %550 = vmatpush1.bf16.msra.mxu0 0
        %551 = vmatprep.subr.bf16.mxu0 0
        %552 = vmatpush1.bf16.msra.mxu0 0
        %553 = vmatprep.subr.bf16.mxu0 0
        %554 = vmatpush1.bf16.msra.mxu0 0
        %555 = vmatprep.subr.bf16.mxu0 0
        %556 = vmatpush1.bf16.msra.mxu0 0
        %557 = vmatprep.subr.bf16.mxu0 0
        %558 = vmatpush1.bf16.msra.mxu0 %v539
        %559 = vmatprep.subr.bf16.mxu0 0
        %560 = vmatpush1.bf16.msra.mxu0 %v538
        %561 = vmatprep.subr.bf16.mxu0 0
        %562 = vmatpush2.bf16.msra.mxu0 0
        %563 = vmatprep.subr.bf16.mxu0 0
        %564 = vmatpush2.bf16.msra.mxu0 0
        %565 = vmatprep.subr.bf16.mxu0 0
        %566 = vmatpush2.bf16.msra.mxu0 0
        %567 = vmatprep.subr.bf16.mxu0 0
        %568 = vmatpush2.bf16.msra.mxu0 0
        %569 = vmatprep.subr.bf16.mxu0 0
        %570 = vmatpush2.bf16.msra.mxu0 0
        %571 = vmatprep.subr.bf16.mxu0 0
        %572 = vmatpush2.bf16.msra.mxu0 0
        %573 = vmatprep.subr.bf16.mxu0 0
        %574 = vmatpush2.bf16.msra.mxu0 0
        %575 = vmatprep.subr.bf16.mxu0 0
        %576 = vmatpush2.bf16.msra.mxu0 0
        %577 = vmatprep.mubr.bf16.mxu0 0
        %578 = vmatmul.mubr.bf16.gmra.mxu0 %v543
        %v579 = vpop.f32.mrf.mxu0
        %v580 = vadd.f32 %v528, %v579
        %v581 = vpop.f32.mrf.mxu0
        %v582 = vpop.f32.mrf.mxu0
        %v583 = vpop.f32.mrf.mxu0
        %584 = vdwg.mxu0
        %586 = vrot.lane.b32.xlu0 %v580, 120
        %v587 = vpop.permute.xlu0 %586
        %589 = vrot.lane.b32.xlu0 %v580, 112
        %v590 = vpop.permute.xlu0 %589
        %592 = vrot.lane.b32.xlu0 %v580, 104
        %v593 = vpop.permute.xlu0 %592
        %v595 = vcombine.low %v580, %v590
        %v596 = vcombine.high %v580, %v590
        %v598 = vunpack.c.l.s4 1983009808
        %v599 = vunpack.c.0.s8 %v598
        %v600 = vlaneseq
        %v601 = vshrl.u32 %v600, 7
        %v602 = vsub.s32 %v599, %v601
        %v603 = vrot.slane %v595, %v602
        %v605 = vunpack.c.l.s4 1983009808
        %v606 = vunpack.c.0.s8 %v605
        %v607 = vlaneseq
        %v608 = vshrl.u32 %v607, 7
        %v609 = vsub.s32 %v606, %v608
        %v610 = vrot.slane %v596, %v609
        %v611 = vcombine.low %v587, %v593
        %v612 = vcombine.high %v587, %v593
        %v614 = vunpack.c.l.s4 1983009808
        %v615 = vunpack.c.0.s8 %v614
        %v616 = vlaneseq
        %v617 = vshrl.u32 %v616, 7
        %v618 = vsub.s32 %v615, %v617
        %v619 = vrot.slane %v611, %v618
        %v621 = vunpack.c.l.s4 1983009808
        %v622 = vunpack.c.0.s8 %v621
        %v623 = vlaneseq
        %v624 = vshrl.u32 %v623, 7
        %v625 = vsub.s32 %v622, %v624
        %v626 = vrot.slane %v612, %v625
        %v627 = vcombine.low %v603, %v619
        %v628 = vcombine.high %v603, %v619
        %v630 = vunpack.c.l.s4 1934713408
        %v631 = vunpack.c.0.s8 %v630
        %v632 = vlaneseq
        %v633 = vshrl.u32 %v632, 7
        %v634 = vsub.s32 %v631, %v633
        %v635 = vrot.slane %v627, %v634
        %v637 = vunpack.c.l.s4 1934713408
        %v638 = vunpack.c.0.s8 %v637
        %v639 = vlaneseq
        %v640 = vshrl.u32 %v639, 7
        %v641 = vsub.s32 %v638, %v640
        %v642 = vrot.slane %v628, %v641
        %v643 = vcombine.low %v610, %v626
        %v644 = vcombine.high %v610, %v626
        %v646 = vunpack.c.l.s4 1934713408
        %v647 = vunpack.c.0.s8 %v646
        %v648 = vlaneseq
        %v649 = vshrl.u32 %v648, 7
        %v650 = vsub.s32 %v647, %v649
        %v651 = vrot.slane %v643, %v650
        %v653 = vunpack.c.l.s4 1934713408
        %v654 = vunpack.c.0.s8 %v653
        %v655 = vlaneseq
        %v656 = vshrl.u32 %v655, 7
        %v657 = vsub.s32 %v654, %v656
        %v658 = vrot.slane %v644, %v657
        %v659 = vcombine.high %v635, 0.0
        %v660 = vcombine.high %v642, 0.0
        %v661 = vcombine.high %v651, 0.0
        %v662 = vcombine.high %v658, 0.0
        %v663 = vcombine.low %v635, %v642
        %v665 = vunpack.c.l.s4 1983009808
        %v666 = vunpack.c.0.s8 %v665
        %v667 = vlaneseq
        %v668 = vshrl.u32 %v667, 7
        %v669 = vsub.s32 %v666, %v668
        %v670 = vrot.slane %v663, %v669
        %v671 = vcombine.low %v659, %v660
        %v673 = vunpack.c.l.s4 1983009808
        %v674 = vunpack.c.0.s8 %v673
        %v675 = vlaneseq
        %v676 = vshrl.u32 %v675, 7
        %v677 = vsub.s32 %v674, %v676
        %v678 = vrot.slane %v671, %v677
        %v679 = vcombine.low %v651, %v658
        %v681 = vunpack.c.l.s4 1983009808
        %v682 = vunpack.c.0.s8 %v681
        %v683 = vlaneseq
        %v684 = vshrl.u32 %v683, 7
        %v685 = vsub.s32 %v682, %v684
        %v686 = vrot.slane %v679, %v685
        %v687 = vcombine.low %v661, %v662
        %v689 = vunpack.c.l.s4 1983009808
        %v690 = vunpack.c.0.s8 %v689
        %v691 = vlaneseq
        %v692 = vshrl.u32 %v691, 7
        %v693 = vsub.s32 %v690, %v692
        %v694 = vrot.slane %v687, %v693
        %v695 = vcombine.low %v670, %v678
        %v696 = vcombine.high %v670, %v678
        %v698 = vunpack.c.l.s4 1934713408
        %v699 = vunpack.c.0.s8 %v698
        %v700 = vlaneseq
        %v701 = vshrl.u32 %v700, 7
        %v702 = vsub.s32 %v699, %v701
        %v703 = vrot.slane %v695, %v702
        %v705 = vunpack.c.l.s4 1934713408
        %v706 = vunpack.c.0.s8 %v705
        %v707 = vlaneseq
        %v708 = vshrl.u32 %v707, 7
        %v709 = vsub.s32 %v706, %v708
        %v710 = vrot.slane %v696, %v709
        %v711 = vcombine.low %v686, %v694
        %v712 = vcombine.high %v686, %v694
        %v714 = vunpack.c.l.s4 1934713408
        %v715 = vunpack.c.0.s8 %v714
        %v716 = vlaneseq
        %v717 = vshrl.u32 %v716, 7
        %v718 = vsub.s32 %v715, %v717
        %v719 = vrot.slane %v711, %v718
        %v721 = vunpack.c.l.s4 1934713408
        %v722 = vunpack.c.0.s8 %v721
        %v723 = vlaneseq
        %v724 = vshrl.u32 %v723, 7
        %v725 = vsub.s32 %v722, %v724
        %v726 = vrot.slane %v712, %v725
        %v727 = vcombine.low %v703, %v719
        %v728 = vcombine.high %v703, %v719
        %v729 = vcombine.low %v710, %v726
        %v730 = vcombine.high %v710, %v726
        %v731 = vpack.c.bf16 %v727, %v727
        %v732 = vpack.c.bf16 %v728, %v728
        %v733 = vpack.c.bf16 %v729, %v729
        %v734 = vpack.c.bf16 %v730, %v730
        %vm735 = vcmask 60416
        %736 = vst.msk [vmem:[%s470] sm:$0xf] %vm735, %v731
        %737 = vst.msk [vmem:[%s470 + $0x4] sm:$0xf] %vm735, %v732
        %738 = vst.msk [vmem:[%s470 + $0x8] sm:$0xf] %vm735, %v733
        %739 = vst.msk [vmem:[%s470 + $0xc] sm:$0xf] %vm735, %v734
        %v740 = vld [vmem:[#allocation7] sm:$0xf]
        %v741 = vld [vmem:[#allocation7 + $0x4] sm:$0xf]
        %v742 = vld [vmem:[#allocation7 + $0x8] sm:$0xf]
        %v743 = vld [vmem:[#allocation7 + $0xc] sm:$0xf]
        %v744 = vld [vmem:[%s6] sm:$0x1]
        %v746 = vlaneseq
        %v747 = vshrl.u32 %v746, 7
        %v748 = vsub.s32 0, %v747
        %v749 = vrot.slane %v744, %v748
        %v755 = vunpack.c.l.b16 %v740
        %v756 = vunpack.c.l.b16 %v741
        %v757 = vunpack.c.l.b16 %v742
        %v758 = vunpack.c.l.b16 %v743
        %v759 = vpack.c.b16 %v756, %v755
        %v760 = vpack.c.b16 %v758, %v757
        %763 = vmatprep.subr.bf16.mxu0 0
        %764 = vmatpush1.bf16.msra.mxu0 0
        %765 = vmatprep.subr.bf16.mxu0 0
        %766 = vmatpush1.bf16.msra.mxu0 0
        %767 = vmatprep.subr.bf16.mxu0 0
        %768 = vmatpush1.bf16.msra.mxu0 0
        %769 = vmatprep.subr.bf16.mxu0 0
        %770 = vmatpush1.bf16.msra.mxu0 0
        %771 = vmatprep.subr.bf16.mxu0 0
        %772 = vmatpush1.bf16.msra.mxu0 0
        %773 = vmatprep.subr.bf16.mxu0 0
        %774 = vmatpush1.bf16.msra.mxu0 0
        %775 = vmatprep.subr.bf16.mxu0 0
        %776 = vmatpush1.bf16.msra.mxu0 %v760
        %777 = vmatprep.subr.bf16.mxu0 0
        %778 = vmatpush1.bf16.msra.mxu0 %v759
        %779 = vmatprep.subr.bf16.mxu0 0
        %780 = vmatpush2.bf16.msra.mxu0 0
        %781 = vmatprep.subr.bf16.mxu0 0
        %782 = vmatpush2.bf16.msra.mxu0 0
        %783 = vmatprep.subr.bf16.mxu0 0
        %784 = vmatpush2.bf16.msra.mxu0 0
        %785 = vmatprep.subr.bf16.mxu0 0
        %786 = vmatpush2.bf16.msra.mxu0 0
        %787 = vmatprep.subr.bf16.mxu0 0
        %788 = vmatpush2.bf16.msra.mxu0 0
        %789 = vmatprep.subr.bf16.mxu0 0
        %790 = vmatpush2.bf16.msra.mxu0 0
        %791 = vmatprep.subr.bf16.mxu0 0
        %792 = vmatpush2.bf16.msra.mxu0 0
        %793 = vmatprep.subr.bf16.mxu0 0
        %794 = vmatpush2.bf16.msra.mxu0 0
        %795 = vmatprep.mubr.bf16.mxu0 0
        %796 = vmatmul.mubr.bf16.gmra.mxu0 %v543
        %v797 = vpop.f32.mrf.mxu0
        %v798 = vadd.f32 %v749, %v797
        %v799 = vpop.f32.mrf.mxu0
        %v800 = vpop.f32.mrf.mxu0
        %v801 = vpop.f32.mrf.mxu0
        %802 = vdwg.mxu0
        %804 = vrot.lane.b32.xlu0 %v798, 120
        %v805 = vpop.permute.xlu0 %804
        %807 = vrot.lane.b32.xlu0 %v798, 112
        %v808 = vpop.permute.xlu0 %807
        %810 = vrot.lane.b32.xlu0 %v798, 104
        %v811 = vpop.permute.xlu0 %810
        %v813 = vcombine.low %v798, %v808
        %v814 = vcombine.high %v798, %v808
        %v816 = vunpack.c.l.s4 1983009808
        %v817 = vunpack.c.0.s8 %v816
        %v818 = vlaneseq
        %v819 = vshrl.u32 %v818, 7
        %v820 = vsub.s32 %v817, %v819
        %v821 = vrot.slane %v813, %v820
        %v823 = vunpack.c.l.s4 1983009808
        %v824 = vunpack.c.0.s8 %v823
        %v825 = vlaneseq
        %v826 = vshrl.u32 %v825, 7
        %v827 = vsub.s32 %v824, %v826
        %v828 = vrot.slane %v814, %v827
        %v829 = vcombine.low %v805, %v811
        %v830 = vcombine.high %v805, %v811
        %v832 = vunpack.c.l.s4 1983009808
        %v833 = vunpack.c.0.s8 %v832
        %v834 = vlaneseq
        %v835 = vshrl.u32 %v834, 7
        %v836 = vsub.s32 %v833, %v835
        %v837 = vrot.slane %v829, %v836
        %v839 = vunpack.c.l.s4 1983009808
        %v840 = vunpack.c.0.s8 %v839
        %v841 = vlaneseq
        %v842 = vshrl.u32 %v841, 7
        %v843 = vsub.s32 %v840, %v842
        %v844 = vrot.slane %v830, %v843
        %v845 = vcombine.low %v821, %v837
        %v846 = vcombine.high %v821, %v837
        %v848 = vunpack.c.l.s4 1934713408
        %v849 = vunpack.c.0.s8 %v848
        %v850 = vlaneseq
        %v851 = vshrl.u32 %v850, 7
        %v852 = vsub.s32 %v849, %v851
        %v853 = vrot.slane %v845, %v852
        %v855 = vunpack.c.l.s4 1934713408
        %v856 = vunpack.c.0.s8 %v855
        %v857 = vlaneseq
        %v858 = vshrl.u32 %v857, 7
        %v859 = vsub.s32 %v856, %v858
        %v860 = vrot.slane %v846, %v859
        %v861 = vcombine.low %v828, %v844
        %v862 = vcombine.high %v828, %v844
        %v864 = vunpack.c.l.s4 1934713408
        %v865 = vunpack.c.0.s8 %v864
        %v866 = vlaneseq
        %v867 = vshrl.u32 %v866, 7
        %v868 = vsub.s32 %v865, %v867
        %v869 = vrot.slane %v861, %v868
        %v871 = vunpack.c.l.s4 1934713408
        %v872 = vunpack.c.0.s8 %v871
        %v873 = vlaneseq
        %v874 = vshrl.u32 %v873, 7
        %v875 = vsub.s32 %v872, %v874
        %v876 = vrot.slane %v862, %v875
        %v877 = vcombine.high %v853, 0.0
        %v878 = vcombine.high %v860, 0.0
        %v879 = vcombine.high %v869, 0.0
        %v880 = vcombine.high %v876, 0.0
        %v881 = vcombine.low %v853, %v860
        %v883 = vunpack.c.l.s4 1983009808
        %v884 = vunpack.c.0.s8 %v883
        %v885 = vlaneseq
        %v886 = vshrl.u32 %v885, 7
        %v887 = vsub.s32 %v884, %v886
        %v888 = vrot.slane %v881, %v887
        %v889 = vcombine.low %v877, %v878
        %v891 = vunpack.c.l.s4 1983009808
        %v892 = vunpack.c.0.s8 %v891
        %v893 = vlaneseq
        %v894 = vshrl.u32 %v893, 7
        %v895 = vsub.s32 %v892, %v894
        %v896 = vrot.slane %v889, %v895
        %v897 = vcombine.low %v869, %v876
        %v899 = vunpack.c.l.s4 1983009808
        %v900 = vunpack.c.0.s8 %v899
        %v901 = vlaneseq
        %v902 = vshrl.u32 %v901, 7
        %v903 = vsub.s32 %v900, %v902
        %v904 = vrot.slane %v897, %v903
        %v905 = vcombine.low %v879, %v880
        %v907 = vunpack.c.l.s4 1983009808
        %v908 = vunpack.c.0.s8 %v907
        %v909 = vlaneseq
        %v910 = vshrl.u32 %v909, 7
        %v911 = vsub.s32 %v908, %v910
        %v912 = vrot.slane %v905, %v911
        %v913 = vcombine.low %v888, %v896
        %v914 = vcombine.high %v888, %v896
        %v916 = vunpack.c.l.s4 1934713408
        %v917 = vunpack.c.0.s8 %v916
        %v918 = vlaneseq
        %v919 = vshrl.u32 %v918, 7
        %v920 = vsub.s32 %v917, %v919
        %v921 = vrot.slane %v913, %v920
        %v923 = vunpack.c.l.s4 1934713408
        %v924 = vunpack.c.0.s8 %v923
        %v925 = vlaneseq
        %v926 = vshrl.u32 %v925, 7
        %v927 = vsub.s32 %v924, %v926
        %v928 = vrot.slane %v914, %v927
        %v929 = vcombine.low %v904, %v912
        %v930 = vcombine.high %v904, %v912
        %v932 = vunpack.c.l.s4 1934713408
        %v933 = vunpack.c.0.s8 %v932
        %v934 = vlaneseq
        %v935 = vshrl.u32 %v934, 7
        %v936 = vsub.s32 %v933, %v935
        %v937 = vrot.slane %v929, %v936
        %v939 = vunpack.c.l.s4 1934713408
        %v940 = vunpack.c.0.s8 %v939
        %v941 = vlaneseq
        %v942 = vshrl.u32 %v941, 7
        %v943 = vsub.s32 %v940, %v942
        %v944 = vrot.slane %v930, %v943
        %v945 = vcombine.low %v921, %v937
        %v946 = vcombine.high %v921, %v937
        %v947 = vcombine.low %v928, %v944
        %v948 = vcombine.high %v928, %v944
        %v949 = vpack.c.bf16 %v945, %v945
        %v950 = vpack.c.bf16 %v946, %v946
        %v951 = vpack.c.bf16 %v947, %v947
        %v952 = vpack.c.bf16 %v948, %v948
        %953 = vst.msk [vmem:[%s477] sm:$0xf] %vm735, %v949
        %954 = vst.msk [vmem:[%s477 + $0x4] sm:$0xf] %vm735, %v950
        %955 = vst.msk [vmem:[%s477 + $0x8] sm:$0xf] %vm735, %v951
        %956 = vst.msk [vmem:[%s477 + $0xc] sm:$0xf] %vm735, %v952
        %v957 = vld [vmem:[#allocation8] sm:$0xf]
        %v958 = vld [vmem:[#allocation8 + $0x4] sm:$0xf]
        %v959 = vld [vmem:[#allocation8 + $0x8] sm:$0xf]
        %v960 = vld [vmem:[#allocation8 + $0xc] sm:$0xf]
        %v961 = vld [vmem:[%s8] sm:$0x1]
        %v963 = vlaneseq
        %v964 = vshrl.u32 %v963, 7
        %v965 = vsub.s32 0, %v964
        %v966 = vrot.slane %v961, %v965
        %v972 = vunpack.c.l.b16 %v957
        %v973 = vunpack.c.l.b16 %v958
        %v974 = vunpack.c.l.b16 %v959
        %v975 = vunpack.c.l.b16 %v960
        %v976 = vpack.c.b16 %v973, %v972
        %v977 = vpack.c.b16 %v975, %v974
        %980 = vmatprep.subr.bf16.mxu0 0
        %981 = vmatpush1.bf16.msra.mxu0 0
        %982 = vmatprep.subr.bf16.mxu0 0
        %983 = vmatpush1.bf16.msra.mxu0 0
        %984 = vmatprep.subr.bf16.mxu0 0
        %985 = vmatpush1.bf16.msra.mxu0 0
        %986 = vmatprep.subr.bf16.mxu0 0
        %987 = vmatpush1.bf16.msra.mxu0 0
        %988 = vmatprep.subr.bf16.mxu0 0
        %989 = vmatpush1.bf16.msra.mxu0 0
        %990 = vmatprep.subr.bf16.mxu0 0
        %991 = vmatpush1.bf16.msra.mxu0 0
        %992 = vmatprep.subr.bf16.mxu0 0
        %993 = vmatpush1.bf16.msra.mxu0 %v977
        %994 = vmatprep.subr.bf16.mxu0 0
        %995 = vmatpush1.bf16.msra.mxu0 %v976
        %996 = vmatprep.subr.bf16.mxu0 0
        %997 = vmatpush2.bf16.msra.mxu0 0
        %998 = vmatprep.subr.bf16.mxu0 0
        %999 = vmatpush2.bf16.msra.mxu0 0
        %1000 = vmatprep.subr.bf16.mxu0 0
        %1001 = vmatpush2.bf16.msra.mxu0 0
        %1002 = vmatprep.subr.bf16.mxu0 0
        %1003 = vmatpush2.bf16.msra.mxu0 0
        %1004 = vmatprep.subr.bf16.mxu0 0
        %1005 = vmatpush2.bf16.msra.mxu0 0
        %1006 = vmatprep.subr.bf16.mxu0 0
        %1007 = vmatpush2.bf16.msra.mxu0 0
        %1008 = vmatprep.subr.bf16.mxu0 0
        %1009 = vmatpush2.bf16.msra.mxu0 0
        %1010 = vmatprep.subr.bf16.mxu0 0
        %1011 = vmatpush2.bf16.msra.mxu0 0
        %1012 = vmatprep.mubr.bf16.mxu0 0
        %1013 = vmatmul.mubr.bf16.gmra.mxu0 %v543
        %v1014 = vpop.f32.mrf.mxu0
        %v1015 = vadd.f32 %v966, %v1014
        %v1016 = vpop.f32.mrf.mxu0
        %v1017 = vpop.f32.mrf.mxu0
        %v1018 = vpop.f32.mrf.mxu0
        %1019 = vdwg.mxu0
        %1021 = vrot.lane.b32.xlu0 %v1015, 120
        %v1022 = vpop.permute.xlu0 %1021
        %1024 = vrot.lane.b32.xlu0 %v1015, 112
        %v1025 = vpop.permute.xlu0 %1024
        %1027 = vrot.lane.b32.xlu0 %v1015, 104
        %v1028 = vpop.permute.xlu0 %1027
        %v1030 = vcombine.low %v1015, %v1025
        %v1031 = vcombine.high %v1015, %v1025
        %v1033 = vunpack.c.l.s4 1983009808
        %v1034 = vunpack.c.0.s8 %v1033
        %v1035 = vlaneseq
        %v1036 = vshrl.u32 %v1035, 7
        %v1037 = vsub.s32 %v1034, %v1036
        %v1038 = vrot.slane %v1030, %v1037
        %v1040 = vunpack.c.l.s4 1983009808
        %v1041 = vunpack.c.0.s8 %v1040
        %v1042 = vlaneseq
        %v1043 = vshrl.u32 %v1042, 7
        %v1044 = vsub.s32 %v1041, %v1043
        %v1045 = vrot.slane %v1031, %v1044
        %v1046 = vcombine.low %v1022, %v1028
        %v1047 = vcombine.high %v1022, %v1028
        %v1049 = vunpack.c.l.s4 1983009808
        %v1050 = vunpack.c.0.s8 %v1049
        %v1051 = vlaneseq
        %v1052 = vshrl.u32 %v1051, 7
        %v1053 = vsub.s32 %v1050, %v1052
        %v1054 = vrot.slane %v1046, %v1053
        %v1056 = vunpack.c.l.s4 1983009808
        %v1057 = vunpack.c.0.s8 %v1056
        %v1058 = vlaneseq
        %v1059 = vshrl.u32 %v1058, 7
        %v1060 = vsub.s32 %v1057, %v1059
        %v1061 = vrot.slane %v1047, %v1060
        %v1062 = vcombine.low %v1038, %v1054
        %v1063 = vcombine.high %v1038, %v1054
        %v1065 = vunpack.c.l.s4 1934713408
        %v1066 = vunpack.c.0.s8 %v1065
        %v1067 = vlaneseq
        %v1068 = vshrl.u32 %v1067, 7
        %v1069 = vsub.s32 %v1066, %v1068
        %v1070 = vrot.slane %v1062, %v1069
        %v1072 = vunpack.c.l.s4 1934713408
        %v1073 = vunpack.c.0.s8 %v1072
        %v1074 = vlaneseq
        %v1075 = vshrl.u32 %v1074, 7
        %v1076 = vsub.s32 %v1073, %v1075
        %v1077 = vrot.slane %v1063, %v1076
        %v1078 = vcombine.low %v1045, %v1061
        %v1079 = vcombine.high %v1045, %v1061
        %v1081 = vunpack.c.l.s4 1934713408
        %v1082 = vunpack.c.0.s8 %v1081
        %v1083 = vlaneseq
        %v1084 = vshrl.u32 %v1083, 7
        %v1085 = vsub.s32 %v1082, %v1084
        %v1086 = vrot.slane %v1078, %v1085
        %v1088 = vunpack.c.l.s4 1934713408
        %v1089 = vunpack.c.0.s8 %v1088
        %v1090 = vlaneseq
        %v1091 = vshrl.u32 %v1090, 7
        %v1092 = vsub.s32 %v1089, %v1091
        %v1093 = vrot.slane %v1079, %v1092
        %v1094 = vcombine.high %v1070, 0.0
        %v1095 = vcombine.high %v1077, 0.0
        %v1096 = vcombine.high %v1086, 0.0
        %v1097 = vcombine.high %v1093, 0.0
        %v1098 = vcombine.low %v1070, %v1077
        %v1100 = vunpack.c.l.s4 1983009808
        %v1101 = vunpack.c.0.s8 %v1100
        %v1102 = vlaneseq
        %v1103 = vshrl.u32 %v1102, 7
        %v1104 = vsub.s32 %v1101, %v1103
        %v1105 = vrot.slane %v1098, %v1104
        %v1106 = vcombine.low %v1094, %v1095
        %v1108 = vunpack.c.l.s4 1983009808
        %v1109 = vunpack.c.0.s8 %v1108
        %v1110 = vlaneseq
        %v1111 = vshrl.u32 %v1110, 7
        %v1112 = vsub.s32 %v1109, %v1111
        %v1113 = vrot.slane %v1106, %v1112
        %v1114 = vcombine.low %v1086, %v1093
        %v1116 = vunpack.c.l.s4 1983009808
        %v1117 = vunpack.c.0.s8 %v1116
        %v1118 = vlaneseq
        %v1119 = vshrl.u32 %v1118, 7
        %v1120 = vsub.s32 %v1117, %v1119
        %v1121 = vrot.slane %v1114, %v1120
        %v1122 = vcombine.low %v1096, %v1097
        %v1124 = vunpack.c.l.s4 1983009808
        %v1125 = vunpack.c.0.s8 %v1124
        %v1126 = vlaneseq
        %v1127 = vshrl.u32 %v1126, 7
        %v1128 = vsub.s32 %v1125, %v1127
        %v1129 = vrot.slane %v1122, %v1128
        %v1130 = vcombine.low %v1105, %v1113
        %v1131 = vcombine.high %v1105, %v1113
        %v1133 = vunpack.c.l.s4 1934713408
        %v1134 = vunpack.c.0.s8 %v1133
        %v1135 = vlaneseq
        %v1136 = vshrl.u32 %v1135, 7
        %v1137 = vsub.s32 %v1134, %v1136
        %v1138 = vrot.slane %v1130, %v1137
        %v1140 = vunpack.c.l.s4 1934713408
        %v1141 = vunpack.c.0.s8 %v1140
        %v1142 = vlaneseq
        %v1143 = vshrl.u32 %v1142, 7
        %v1144 = vsub.s32 %v1141, %v1143
        %v1145 = vrot.slane %v1131, %v1144
        %v1146 = vcombine.low %v1121, %v1129
        %v1147 = vcombine.high %v1121, %v1129
        %v1149 = vunpack.c.l.s4 1934713408
        %v1150 = vunpack.c.0.s8 %v1149
        %v1151 = vlaneseq
        %v1152 = vshrl.u32 %v1151, 7
        %v1153 = vsub.s32 %v1150, %v1152
        %v1154 = vrot.slane %v1146, %v1153
        %v1156 = vunpack.c.l.s4 1934713408
        %v1157 = vunpack.c.0.s8 %v1156
        %v1158 = vlaneseq
        %v1159 = vshrl.u32 %v1158, 7
        %v1160 = vsub.s32 %v1157, %v1159
        %v1161 = vrot.slane %v1147, %v1160
        %v1162 = vcombine.low %v1138, %v1154
        %v1163 = vcombine.high %v1138, %v1154
        %v1164 = vcombine.low %v1145, %v1161
        %v1165 = vcombine.high %v1145, %v1161
        %v1166 = vpack.c.bf16 %v1162, %v1162
        %v1167 = vpack.c.bf16 %v1163, %v1163
        %v1168 = vpack.c.bf16 %v1164, %v1164
        %v1169 = vpack.c.bf16 %v1165, %v1165
        %1170 = vst.msk [vmem:[%s484] sm:$0xf] %vm735, %v1166
        %1171 = vst.msk [vmem:[%s484 + $0x4] sm:$0xf] %vm735, %v1167
        %1172 = vst.msk [vmem:[%s484 + $0x8] sm:$0xf] %vm735, %v1168
        %1173 = vst.msk [vmem:[%s484 + $0xc] sm:$0xf] %vm735, %v1169
        %s1174 = sand.u32 %s252, 1
        %s1175 = scalar_lea.sflag [#allocation4], %s1174
        %s1176 = sand.u32 %s252, 1
        %s1177 = smul.addr %s1176, 16
        %s1178 = scalar_lea.vmem [#allocation10], %s1177
        %s1179 = sand.u32 %s34, 1
        %s1180 = scalar_lea.sflag [#allocation12], %s1179
        %s1181 = sand.u32 %s280, 1
        %s1182 = smul.addr %s1181, 16
        %s1183 = scalar_lea.vmem [#allocation11], %s1182
        %s1184 = sand.u32 %s34, 1
        %s1185 = scalar_lea.sflag [#allocation12], %s1184
        %s1186 = sand.u32 %s308, 1
        %s1187 = smul.addr %s1186, 16
        %s1188 = scalar_lea.vmem [#allocation13], %s1187
        // Predicated region
        $region73: #{tpu_custom_call.1} parent=55 // pred_check
          %p1189 = pneg %p262
        $region74: #{tpu_custom_call.1} parent=55 // pred_check_branch
          %1191 = sbr.rel (%p1189) target = $region76
        $region75: #{tpu_custom_call.1} parent=55 // pred_region
          %s1193 = ssub.s32 256, 256
          %1194 = vsyncadd %s1175, %s1193
          %s1195 = smul.addr %s38, 4
          %s1196 = sadd.s32 %s39, %s1195
          %s1197 = smul.addr %s1196, 64
          %s1198 = scalar_lea.hbm %s9, %s1197
          %s1199 = sshll.u32 %s1178, 4
          %s1200 = int_to_ptr.vmem [resolvable:$true] %s1199
          %1205 = dma.vmem_to_hbm [thread:$0]  %s1200, 256, %s1198, %s1175, 64, 64, 4
        $region76: #{tpu_custom_call.1} parent=55 // pred_fallthru
          _
        // Predicated region
        $region77: #{tpu_custom_call.1} parent=55 // pred_check
          %p1206 = pneg %p290
        $region78: #{tpu_custom_call.1} parent=55 // pred_check_branch
          %1208 = sbr.rel (%p1206) target = $region80
        $region79: #{tpu_custom_call.1} parent=55 // pred_region
          %s1210 = ssub.s32 256, 256
          %1211 = vsyncadd %s1180, %s1210
          %s1212 = smul.addr %s38, 4
          %s1213 = sadd.s32 %s39, %s1212
          %s1214 = smul.addr %s1213, 64
          %s1215 = scalar_lea.hbm %s10, %s1214
          %s1216 = sshll.u32 %s1183, 4
          %s1217 = int_to_ptr.vmem [resolvable:$true] %s1216
          %1222 = dma.vmem_to_hbm [thread:$0]  %s1217, 256, %s1215, %s1180, 64, 64, 4
        $region80: #{tpu_custom_call.1} parent=55 // pred_fallthru
          _
        // Predicated region
        $region81: #{tpu_custom_call.1} parent=55 // pred_check
          %p1223 = pneg %p318
        $region82: #{tpu_custom_call.1} parent=55 // pred_check_branch
          %1225 = sbr.rel (%p1223) target = $region84
        $region83: #{tpu_custom_call.1} parent=55 // pred_region
          %s1227 = ssub.s32 256, 256
          %1228 = vsyncadd %s1185, %s1227
          %s1229 = smul.addr %s38, 4
          %s1230 = sadd.s32 %s39, %s1229
          %s1231 = smul.addr %s1230, 64
          %s1232 = scalar_lea.hbm %s11, %s1231
          %s1233 = sshll.u32 %s1188, 4
          %s1234 = int_to_ptr.vmem [resolvable:$true] %s1233
          %1239 = dma.vmem_to_hbm [thread:$0]  %s1234, 256, %s1232, %s1185, 64, 64, 4
        $region84: #{tpu_custom_call.1} parent=55 // pred_fallthru
          _
      $region56: #{tpu_custom_call.1} parent=5 // pred_fallthru
        _
      %p1240 = scmp.le.s32.totalorder 2, %s29
      // Predicated region
      $region85: #{tpu_custom_call.1} parent=5 // pred_check
        %p1241 = pneg %p1240
      $region86: #{tpu_custom_call.1} parent=5 // pred_check_branch
        %1243 = sbr.rel (%p1241) target = $region88
      $region87: #{tpu_custom_call.1} parent=5 // pred_region
        %s1244 = ssub.s32 %s29, 2
        // Predicated region
        $region89: #{tpu_custom_call.1} parent=87 // pred_check
          %p1245 = pneg %p268
        $region90: #{tpu_custom_call.1} parent=87 // pred_check_branch
          %1247 = sbr.rel (%p1245) target = $region92
        $region91: #{tpu_custom_call.1} parent=87 // pred_region
          %s1248 = sand.u32 %s253, 1
          %s1249 = scalar_lea.sflag [#allocation4], %s1248
          %s1250 = sand.u32 %s253, 1
          %s1251 = smul.addr %s1250, 16
          %s1252 = scalar_lea.vmem [#allocation10], %s1251
          %1253 = dma.done %s1249, 256
        $region92: #{tpu_custom_call.1} parent=87 // pred_fallthru
          _
        // Predicated region
        $region93: #{tpu_custom_call.1} parent=87 // pred_check
          %p1254 = pneg %p296
        $region94: #{tpu_custom_call.1} parent=87 // pred_check_branch
          %1256 = sbr.rel (%p1254) target = $region96
        $region95: #{tpu_custom_call.1} parent=87 // pred_region
          %s1257 = sand.u32 %s35, 1
          %s1258 = scalar_lea.sflag [#allocation12], %s1257
          %s1259 = sand.u32 %s281, 1
          %s1260 = smul.addr %s1259, 16
          %s1261 = scalar_lea.vmem [#allocation11], %s1260
          %1262 = dma.done %s1258, 256
        $region96: #{tpu_custom_call.1} parent=87 // pred_fallthru
          _
        // Predicated region
        $region97: #{tpu_custom_call.1} parent=87 // pred_check
          %p1263 = pneg %p324
        $region98: #{tpu_custom_call.1} parent=87 // pred_check_branch
          %1265 = sbr.rel (%p1263) target = $region100
        $region99: #{tpu_custom_call.1} parent=87 // pred_region
          %s1266 = sand.u32 %s35, 1
          %s1267 = scalar_lea.sflag [#allocation12], %s1266
          %s1268 = sand.u32 %s309, 1
          %s1269 = smul.addr %s1268, 16
          %s1270 = scalar_lea.vmem [#allocation13], %s1269
          %1271 = dma.done %s1267, 256
        $region100: #{tpu_custom_call.1} parent=87 // pred_fallthru
          _
      $region88: #{tpu_custom_call.1} parent=5 // pred_fallthru
        _
    $region6: #{tpu_custom_call.1} parent=1 // loop_footer
      %s33 = sadd.s32 1, %s29
    $region7: #{tpu_custom_call.1} parent=1 // loop_footer_branch
      %28 = sbr.rel target = $region3
    $region8: #{tpu_custom_call.1} parent=1 // loop_exit
      _
    %1272 = vsyncpa [#allocation3], 1
    %s1273 = scalar_lea.sflag [#allocation3], 1
    %1274 = vsyncpa %s1273, 1
    %1275 = vsyncpa [#allocation6], 1
    %1276 = vsyncpa [#allocation9], 1
    %1277 = vsyncpa [#allocation4], 1
    %s1278 = scalar_lea.sflag [#allocation4], 1
    %1279 = vsyncpa %s1278, 1
    %1280 = vsyncpa [#allocation12], 1
    %s1281 = scalar_lea.sflag [#allocation12], 1
    %1282 = vsyncpa %s1281, 1

</llo_original>
